<compile_context>
chip_gen: v7x
topology: tpu7x:2x2x1
jax: 0.10.0
libtpu: 0.0.40
codegen_flags: <defaults>
</compile_context>

<pallas_src>
import functools

import jax
import jax.numpy as jnp
import numpy as np
from jax import lax
from jax.experimental import pallas as pl
from jax.experimental.pallas import tpu as pltpu


def _align8(n):
    return -(-n // 8) * 8


def _slab_layout(input_size, hidden_size):
    """Row offsets of each parameter inside the packed (rows, 4H) slab.

    Every segment starts on an 8-row (sublane) boundary so the in-kernel
    static slices never straddle a sublane tile.
    """
    H = hidden_size
    G = 4 * H
    off = {}
    r = 0
    for name, rows in (("wih", input_size), ("whh", H), ("b", 1),
                       ("w1", H), ("b1", 1),
                       ("w2", G), ("b2", 1),
                       ("wm", G), ("bm", 1)):
        off[name] = r
        r = _align8(r + rows)
    return off, r, G


def pack_params(params, input_size, hidden_size, output_size):
    """One-time packing of all parameters into a single lane-dense f32 slab."""
    H = hidden_size
    G = 4 * H
    # Kernel + slab assume 4*hidden_size is a lane-exact multiple of 128 so
    # every matmul output and the mean store are unmasked / lane-dense.
    assert G % 128 == 0, "pack_params assumes 4*hidden_size % 128 == 0"
    off, rows, _ = _slab_layout(input_size, H)

    slab = np.zeros((rows, G), np.float32)
    slab[off["wih"]:off["wih"] + input_size, :] = np.asarray(params["wih"])
    slab[off["whh"]:off["whh"] + H, :] = np.asarray(params["whh"])
    slab[off["b"], :] = np.asarray(params["b"]).reshape(G)
    slab[off["w1"]:off["w1"] + H, :H] = np.asarray(params["w1"])
    slab[off["b1"], :H] = np.asarray(params["b1"]).reshape(H)
    # w2 / wm are padded to (4H, 4H): extra rows/cols are zero, so the padded
    # lanes of z1 / z2 / mean stay exactly zero (relu(0)=0, 0-bias).
    slab[off["w2"]:off["w2"] + H, :H] = np.asarray(params["w2"])
    slab[off["b2"], :H] = np.asarray(params["b2"]).reshape(H)
    slab[off["wm"]:off["wm"] + H, :output_size] = np.asarray(params["wm"])
    slab[off["bm"], :output_size] = np.asarray(params["bm"]).reshape(output_size)
    return jnp.asarray(slab)


def _policy_kernel(seq_len, input_size, hidden_size, off,
                   x_ref, hc0_ref, w_ref,
                   mean_ref, hc_out_ref):
    H = hidden_size
    G = 4 * H

    # --- static slices into the single packed parameter slab (one DMA) ------
    wih = w_ref[off["wih"]:off["wih"] + input_size, :]        # (in, 4H)
    whh = w_ref[off["whh"]:off["whh"] + H, :]                 # (H,  4H)
    b = w_ref[off["b"]:off["b"] + 1, :]                       # (1,  4H)
    w1 = w_ref[off["w1"]:off["w1"] + H, :]                    # (H,  4H) cols>=H are 0
    b1 = w_ref[off["b1"]:off["b1"] + 1, :]
    w2 = w_ref[off["w2"]:off["w2"] + G, :]                    # (4H, 4H) zero-padded
    b2 = w_ref[off["b2"]:off["b2"] + 1, :]
    wm = w_ref[off["wm"]:off["wm"] + G, :]                    # (4H, 4H) zero-padded
    bm = w_ref[off["bm"]:off["bm"] + 1, :]

    # Whole-sequence input projection, hoisted off the recurrent chain:
    # (seq, in) @ (in, 4H) + (1, 4H) -> (seq, 4H)  (= one vreg at seq=8).
    xp = jnp.dot(x_ref[...], wih, preferred_element_type=jnp.float32) + b

    # Per-lane scale / offset so all four gate nonlinearities collapse into a
    # SINGLE full-width tanh per step:  sigmoid(x) = 0.5*tanh(0.5*x) + 0.5,
    # g-gate lanes keep plain tanh.  Loop-invariant -> hoisted.
    lane = lax.broadcasted_iota(jnp.int32, (1, G), 1)
    is_g = (lane >= 2 * H) & (lane < 3 * H)
    pre_scale = jnp.where(is_g, 1.0, 0.5).astype(jnp.float32)
    post_scale = pre_scale
    post_off = jnp.where(is_g, 0.0, 0.5).astype(jnp.float32)

    h = hc0_ref[0:1, :]                                       # (1, H)
    c = hc0_ref[1:2, :]                                       # (1, H)

    # Fully unrolled static recurrence: h/c and the collected outputs stay
    # register-resident (no per-step masked VMEM stores, no scratch buffer).
    # TODO(synk): whh could be held in MXU weight registers across the steps
    # via pltpu.matmul_push_rhs/matmul_acc_lhs/matmul_pop; kept as jnp.dot for
    # lowering robustness across v5e/v6e/v7x.
    outs = []
    for t in range(seq_len):
        pre = xp[t:t + 1, :] + jnp.dot(
            h, whh, preferred_element_type=jnp.float32)       # (1, 4H)
        gates = post_scale * jnp.tanh(pre_scale * pre) + post_off
        i_g = gates[:, 0:H]
        f_g = gates[:, H:2 * H]
        g_g = gates[:, 2 * H:3 * H]
        o_g = gates[:, 3 * H:4 * H]
        c = f_g * c + i_g * g_g
        h = o_g * jnp.tanh(c)
        outs.append(h)

    hseq = jnp.concatenate(outs, axis=0)                      # (seq, H)

    # MLP head over the whole sequence; every operand/result is lane-dense
    # (128 wide), and the final mean store is an unmasked (seq, 128) vst.
    z1 = jnp.maximum(
        jnp.dot(hseq, w1, preferred_element_type=jnp.float32) + b1, 0.0)
    z2 = jnp.maximum(
        jnp.dot(z1, w2, preferred_element_type=jnp.float32) + b2, 0.0)
    mean_ref[...] = jnp.dot(z2, wm, preferred_element_type=jnp.float32) + bm

    hc_out_ref[...] = jnp.concatenate([h, c], axis=0)         # (2, H)


def actuator_policy_forward(x, hidden, param_slab, logstd):
    """Pallas forward.  Returns (action_mean, action_log_std, (h_n, c_n))."""
    h0, c0 = hidden
    seq_len, input_size = x.shape
    hidden_size = h0.shape[-1]
    out_size = logstd.shape[-1]
    off, rows, G = _slab_layout(input_size, hidden_size)
    assert param_slab.shape == (rows, G), "param_slab does not match layout"

    # Pack the two hidden-state vectors into one (2, H) input -> one DMA.
    hc0 = jnp.concatenate(
        [h0.reshape(1, hidden_size), c0.reshape(1, hidden_size)],
        axis=0).astype(jnp.float32)

    kernel = functools.partial(
        _policy_kernel, seq_len, input_size, hidden_size, off)
    vmem = lambda: pl.BlockSpec(memory_space=pltpu.MemorySpace.VMEM)

    mean_pad, hc_n = pl.pallas_call(
        kernel,
        out_shape=(
            jax.ShapeDtypeStruct((seq_len, G), jnp.float32),      # padded mean
            jax.ShapeDtypeStruct((2, hidden_size), jnp.float32),  # h_n, c_n
        ),
        in_specs=[vmem(), vmem(), vmem()],
        out_specs=(vmem(), vmem()),
    )(x.astype(jnp.float32), hc0, param_slab)

    # Lane-dense store in-kernel; slice the 4 real output lanes here.
    mean = mean_pad[:, :out_size]
    # Pure parameter broadcast — zero compute value in-kernel.
    logstd_b = jnp.broadcast_to(logstd, mean.shape)
    h_n = hc_n[0].reshape(1, 1, hidden_size)
    c_n = hc_n[1].reshape(1, 1, hidden_size)
    # TODO(synk): for batched rollouts add a leading 'parallel' grid axis over
    # batch (fills the 256-wide MXU on v6e/v7x and uses v7x's second TC).
    return mean, logstd_b, (h_n, c_n)


def init_params(key, input_size, hidden_size, output_size=4):
    """Deterministic synthetic parameters (shapes follow the PyTorch module).

    LSTM weights are gate-fused along the last dim in PyTorch order
    (i, f, g, o) and pre-transposed for row-major `act @ W` matmuls.
    """
    ks = jax.random.split(key, 10)
    s = 1.0 / np.sqrt(hidden_size)

    def unif(k, shape):
        return jax.random.uniform(k, shape, jnp.float32, -s, s)

    params = {
        "wih": unif(ks[0], (input_size, 4 * hidden_size)),
        "whh": unif(ks[1], (hidden_size, 4 * hidden_size)),
        "b": unif(ks[2], (1, 4 * hidden_size)) + unif(ks[3], (1, 4 * hidden_size)),
        "w1": unif(ks[4], (hidden_size, hidden_size)),
        "b1": unif(ks[5], (1, hidden_size)),
        "w2": unif(ks[6], (hidden_size, hidden_size)),
        "b2": unif(ks[7], (1, hidden_size)),
        "wm": unif(ks[8], (hidden_size, output_size)),
        "bm": unif(ks[9], (1, output_size)),
        # nn.Parameter(torch.zeros(output_size))
        "logstd": jnp.zeros((1, output_size), jnp.float32),
    }
    return params


def reference_forward(x, hidden, p):
    """Pure-JAX reference of the PyTorch forward pass (fused-gate weights)."""
    H = hidden[0].shape[-1]
    h = hidden[0].reshape(1, -1)
    c = hidden[1].reshape(1, -1)
    outs = []
    for t in range(x.shape[0]):
        pre = x[t:t + 1] @ p["wih"] + h @ p["whh"] + p["b"]
        i = jax.nn.sigmoid(pre[:, 0:H])
        f = jax.nn.sigmoid(pre[:, H:2 * H])
        g = jnp.tanh(pre[:, 2 * H:3 * H])
        o = jax.nn.sigmoid(pre[:, 3 * H:4 * H])
        c = f * c + i * g
        h = o * jnp.tanh(c)
        outs.append(h)
    hs = jnp.concatenate(outs, axis=0)
    z1 = jnp.maximum(hs @ p["w1"] + p["b1"], 0.0)
    z2 = jnp.maximum(z1 @ p["w2"] + p["b2"], 0.0)
    mean = z2 @ p["wm"] + p["bm"]
    logstd = jnp.broadcast_to(p["logstd"], mean.shape)
    return mean, logstd, (h.reshape(1, 1, -1), c.reshape(1, 1, -1))


if __name__ == "__main__":
    seq_len, input_size, hidden_size, output_size = 8, 16, 32, 4

    key = jax.random.PRNGKey(0)
    k_x, k_h, k_c, k_p = jax.random.split(key, 4)

    x = jax.random.normal(k_x, (seq_len, input_size), jnp.float32)
    h0 = 0.1 * jax.random.normal(k_h, (1, 1, hidden_size), jnp.float32)
    c0 = 0.1 * jax.random.normal(k_c, (1, 1, hidden_size), jnp.float32)
    params = init_params(k_p, input_size, hidden_size, output_size)
    # One-time packing of all parameters into a single lane-dense slab.
    slab = pack_params(params, input_size, hidden_size, output_size)

    mean, logstd, (h_n, c_n) = actuator_policy_forward(
        x, (h0, c0), slab, params["logstd"])
    jax.block_until_ready((mean, logstd, h_n, c_n))

    # Validate against the pure-JAX reference.
    mean_r, logstd_r, (h_r, c_r) = reference_forward(x, (h0, c0), params)
    np.testing.assert_allclose(np.asarray(mean), np.asarray(mean_r),
                               rtol=2e-5, atol=2e-5)
    np.testing.assert_allclose(np.asarray(logstd), np.asarray(logstd_r),
                               rtol=2e-5, atol=2e-5)
    np.testing.assert_allclose(np.asarray(h_n), np.asarray(h_r),
                               rtol=2e-5, atol=2e-5)
    np.testing.assert_allclose(np.asarray(c_n), np.asarray(c_r),
                               rtol=2e-5, atol=2e-5)

    print("KERNEL_OK")
</pallas_src>

<mosaic_0001>
module attributes {stable_mosaic.version = 11 : i64} {
  func.func @_policy_kernel(%arg0: memref<8x16xf32, #tpu.memory_space<vmem>>, %arg1: memref<2x32xf32, #tpu.memory_space<vmem>>, %arg2: memref<368x128xf32, #tpu.memory_space<vmem>>, %arg3: memref<8x128xf32, #tpu.memory_space<vmem>>, %arg4: memref<2x32xf32, #tpu.memory_space<vmem>>) attributes {dimension_semantics = [], scalar_prefetch = 0 : i64, scratch_operands = 0 : i64, tpu.core_type = #tpu.core_type<tc>} {
    %c0 = arith.constant 0 : index
    %c0_0 = arith.constant 0 : index
    %0 = vector.load %arg2[%c0, %c0_0] : memref<368x128xf32, #tpu.memory_space<vmem>>, vector<16x128xf32>
    %c16 = arith.constant 16 : index
    %c0_1 = arith.constant 0 : index
    %1 = vector.load %arg2[%c16, %c0_1] : memref<368x128xf32, #tpu.memory_space<vmem>>, vector<32x128xf32>
    %c48 = arith.constant 48 : index
    %c0_2 = arith.constant 0 : index
    %2 = vector.load %arg2[%c48, %c0_2] : memref<368x128xf32, #tpu.memory_space<vmem>>, vector<1x128xf32>
    %c56 = arith.constant 56 : index
    %c0_3 = arith.constant 0 : index
    %3 = vector.load %arg2[%c56, %c0_3] : memref<368x128xf32, #tpu.memory_space<vmem>>, vector<32x128xf32>
    %c88 = arith.constant 88 : index
    %c0_4 = arith.constant 0 : index
    %4 = vector.load %arg2[%c88, %c0_4] : memref<368x128xf32, #tpu.memory_space<vmem>>, vector<1x128xf32>
    %c96 = arith.constant 96 : index
    %c0_5 = arith.constant 0 : index
    %5 = vector.load %arg2[%c96, %c0_5] : memref<368x128xf32, #tpu.memory_space<vmem>>, vector<128x128xf32>
    %c224 = arith.constant 224 : index
    %c0_6 = arith.constant 0 : index
    %6 = vector.load %arg2[%c224, %c0_6] : memref<368x128xf32, #tpu.memory_space<vmem>>, vector<1x128xf32>
    %c232 = arith.constant 232 : index
    %c0_7 = arith.constant 0 : index
    %7 = vector.load %arg2[%c232, %c0_7] : memref<368x128xf32, #tpu.memory_space<vmem>>, vector<128x128xf32>
    %c360 = arith.constant 360 : index
    %c0_8 = arith.constant 0 : index
    %8 = vector.load %arg2[%c360, %c0_8] : memref<368x128xf32, #tpu.memory_space<vmem>>, vector<1x128xf32>
    %c0_9 = arith.constant 0 : index
    %c0_10 = arith.constant 0 : index
    %9 = vector.load %arg0[%c0_9, %c0_10] : memref<8x16xf32, #tpu.memory_space<vmem>>, vector<8x16xf32>
    %cst = arith.constant dense<0.000000e+00> : vector<8x128xf32>
    %10 = tpu.matmul %9, %0, %cst {dimension_numbers = #tpu.dot_dimension_numbers<[1], [0], [0], [1], [0, 0, 1, 1], [], []>} : vector<8x16xf32>, vector<16x128xf32>, vector<8x128xf32> -> vector<8x128xf32>
    %11 = vector.broadcast %2 : vector<1x128xf32> to vector<8x128xf32>
    %12 = arith.addf %10, %11 : vector<8x128xf32>
    %13 = tpu.iota {dimensions = array<i32: 1>} : vector<1x128xi32>
    %c64_i32 = arith.constant 64 : i32
    %14 = vector.broadcast %c64_i32 : i32 to vector<1x128xi32>
    %15 = arith.cmpi sge, %13, %14 : vector<1x128xi32>
    %c96_i32 = arith.constant 96 : i32
    %16 = vector.broadcast %c96_i32 : i32 to vector<1x128xi32>
    %17 = arith.cmpi slt, %13, %16 : vector<1x128xi32>
    %18 = arith.andi %15, %17 : vector<1x128xi1>
    %cst_11 = arith.constant 1.000000e+00 : f32
    %cst_12 = arith.constant 5.000000e-01 : f32
    %19 = vector.broadcast %cst_11 : f32 to vector<1x128xf32>
    %20 = vector.broadcast %cst_12 : f32 to vector<1x128xf32>
    %21 = arith.select %18, %19, %20 : vector<1x128xi1>, vector<1x128xf32>
    %cst_13 = arith.constant 0.000000e+00 : f32
    %cst_14 = arith.constant 5.000000e-01 : f32
    %22 = vector.broadcast %cst_13 : f32 to vector<1x128xf32>
    %23 = vector.broadcast %cst_14 : f32 to vector<1x128xf32>
    %24 = arith.select %18, %22, %23 : vector<1x128xi1>, vector<1x128xf32>
    %c0_15 = arith.constant 0 : index
    %c0_16 = arith.constant 0 : index
    %25 = vector.load %arg1[%c0_15, %c0_16] : memref<2x32xf32, #tpu.memory_space<vmem>>, vector<1x32xf32>
    %c1 = arith.constant 1 : index
    %c0_17 = arith.constant 0 : index
    %26 = vector.load %arg1[%c1, %c0_17] : memref<2x32xf32, #tpu.memory_space<vmem>>, vector<1x32xf32>
    %27 = vector.extract_strided_slice %12 {offsets = [0, 0], sizes = [1, 128], strides = [1, 1]} : vector<8x128xf32> to vector<1x128xf32>
    %cst_18 = arith.constant dense<0.000000e+00> : vector<1x128xf32>
    %28 = tpu.matmul %25, %1, %cst_18 {dimension_numbers = #tpu.dot_dimension_numbers<[1], [0], [0], [1], [0, 0, 1, 1], [], []>} : vector<1x32xf32>, vector<32x128xf32>, vector<1x128xf32> -> vector<1x128xf32>
    %29 = arith.addf %27, %28 : vector<1x128xf32>
    %30 = arith.mulf %21, %29 : vector<1x128xf32>
    %31 = math.tanh %30 : vector<1x128xf32>
    %32 = arith.mulf %21, %31 : vector<1x128xf32>
    %33 = arith.addf %32, %24 : vector<1x128xf32>
    %34 = vector.extract_strided_slice %33 {offsets = [0, 0], sizes = [1, 32], strides = [1, 1]} : vector<1x128xf32> to vector<1x32xf32>
    %35 = vector.extract_strided_slice %33 {offsets = [0, 32], sizes = [1, 32], strides = [1, 1]} : vector<1x128xf32> to vector<1x32xf32>
    %36 = vector.extract_strided_slice %33 {offsets = [0, 64], sizes = [1, 32], strides = [1, 1]} : vector<1x128xf32> to vector<1x32xf32>
    %37 = vector.extract_strided_slice %33 {offsets = [0, 96], sizes = [1, 32], strides = [1, 1]} : vector<1x128xf32> to vector<1x32xf32>
    %38 = arith.mulf %35, %26 : vector<1x32xf32>
    %39 = arith.mulf %34, %36 : vector<1x32xf32>
    %40 = arith.addf %38, %39 : vector<1x32xf32>
    %41 = math.tanh %40 : vector<1x32xf32>
    %42 = arith.mulf %37, %41 : vector<1x32xf32>
    %43 = vector.extract_strided_slice %12 {offsets = [1, 0], sizes = [1, 128], strides = [1, 1]} : vector<8x128xf32> to vector<1x128xf32>
    %cst_19 = arith.constant dense<0.000000e+00> : vector<1x128xf32>
    %44 = tpu.matmul %42, %1, %cst_19 {dimension_numbers = #tpu.dot_dimension_numbers<[1], [0], [0], [1], [0, 0, 1, 1], [], []>} : vector<1x32xf32>, vector<32x128xf32>, vector<1x128xf32> -> vector<1x128xf32>
    %45 = arith.addf %43, %44 : vector<1x128xf32>
    %46 = arith.mulf %21, %45 : vector<1x128xf32>
    %47 = math.tanh %46 : vector<1x128xf32>
    %48 = arith.mulf %21, %47 : vector<1x128xf32>
    %49 = arith.addf %48, %24 : vector<1x128xf32>
    %50 = vector.extract_strided_slice %49 {offsets = [0, 0], sizes = [1, 32], strides = [1, 1]} : vector<1x128xf32> to vector<1x32xf32>
    %51 = vector.extract_strided_slice %49 {offsets = [0, 32], sizes = [1, 32], strides = [1, 1]} : vector<1x128xf32> to vector<1x32xf32>
    %52 = vector.extract_strided_slice %49 {offsets = [0, 64], sizes = [1, 32], strides = [1, 1]} : vector<1x128xf32> to vector<1x32xf32>
    %53 = vector.extract_strided_slice %49 {offsets = [0, 96], sizes = [1, 32], strides = [1, 1]} : vector<1x128xf32> to vector<1x32xf32>
    %54 = arith.mulf %51, %40 : vector<1x32xf32>
    %55 = arith.mulf %50, %52 : vector<1x32xf32>
    %56 = arith.addf %54, %55 : vector<1x32xf32>
    %57 = math.tanh %56 : vector<1x32xf32>
    %58 = arith.mulf %53, %57 : vector<1x32xf32>
    %59 = vector.extract_strided_slice %12 {offsets = [2, 0], sizes = [1, 128], strides = [1, 1]} : vector<8x128xf32> to vector<1x128xf32>
    %cst_20 = arith.constant dense<0.000000e+00> : vector<1x128xf32>
    %60 = tpu.matmul %58, %1, %cst_20 {dimension_numbers = #tpu.dot_dimension_numbers<[1], [0], [0], [1], [0, 0, 1, 1], [], []>} : vector<1x32xf32>, vector<32x128xf32>, vector<1x128xf32> -> vector<1x128xf32>
    %61 = arith.addf %59, %60 : vector<1x128xf32>
    %62 = arith.mulf %21, %61 : vector<1x128xf32>
    %63 = math.tanh %62 : vector<1x128xf32>
    %64 = arith.mulf %21, %63 : vector<1x128xf32>
    %65 = arith.addf %64, %24 : vector<1x128xf32>
    %66 = vector.extract_strided_slice %65 {offsets = [0, 0], sizes = [1, 32], strides = [1, 1]} : vector<1x128xf32> to vector<1x32xf32>
    %67 = vector.extract_strided_slice %65 {offsets = [0, 32], sizes = [1, 32], strides = [1, 1]} : vector<1x128xf32> to vector<1x32xf32>
    %68 = vector.extract_strided_slice %65 {offsets = [0, 64], sizes = [1, 32], strides = [1, 1]} : vector<1x128xf32> to vector<1x32xf32>
    %69 = vector.extract_strided_slice %65 {offsets = [0, 96], sizes = [1, 32], strides = [1, 1]} : vector<1x128xf32> to vector<1x32xf32>
    %70 = arith.mulf %67, %56 : vector<1x32xf32>
    %71 = arith.mulf %66, %68 : vector<1x32xf32>
    %72 = arith.addf %70, %71 : vector<1x32xf32>
    %73 = math.tanh %72 : vector<1x32xf32>
    %74 = arith.mulf %69, %73 : vector<1x32xf32>
    %75 = vector.extract_strided_slice %12 {offsets = [3, 0], sizes = [1, 128], strides = [1, 1]} : vector<8x128xf32> to vector<1x128xf32>
    %cst_21 = arith.constant dense<0.000000e+00> : vector<1x128xf32>
    %76 = tpu.matmul %74, %1, %cst_21 {dimension_numbers = #tpu.dot_dimension_numbers<[1], [0], [0], [1], [0, 0, 1, 1], [], []>} : vector<1x32xf32>, vector<32x128xf32>, vector<1x128xf32> -> vector<1x128xf32>
    %77 = arith.addf %75, %76 : vector<1x128xf32>
    %78 = arith.mulf %21, %77 : vector<1x128xf32>
    %79 = math.tanh %78 : vector<1x128xf32>
    %80 = arith.mulf %21, %79 : vector<1x128xf32>
    %81 = arith.addf %80, %24 : vector<1x128xf32>
    %82 = vector.extract_strided_slice %81 {offsets = [0, 0], sizes = [1, 32], strides = [1, 1]} : vector<1x128xf32> to vector<1x32xf32>
    %83 = vector.extract_strided_slice %81 {offsets = [0, 32], sizes = [1, 32], strides = [1, 1]} : vector<1x128xf32> to vector<1x32xf32>
    %84 = vector.extract_strided_slice %81 {offsets = [0, 64], sizes = [1, 32], strides = [1, 1]} : vector<1x128xf32> to vector<1x32xf32>
    %85 = vector.extract_strided_slice %81 {offsets = [0, 96], sizes = [1, 32], strides = [1, 1]} : vector<1x128xf32> to vector<1x32xf32>
    %86 = arith.mulf %83, %72 : vector<1x32xf32>
    %87 = arith.mulf %82, %84 : vector<1x32xf32>
    %88 = arith.addf %86, %87 : vector<1x32xf32>
    %89 = math.tanh %88 : vector<1x32xf32>
    %90 = arith.mulf %85, %89 : vector<1x32xf32>
    %91 = vector.extract_strided_slice %12 {offsets = [4, 0], sizes = [1, 128], strides = [1, 1]} : vector<8x128xf32> to vector<1x128xf32>
    %cst_22 = arith.constant dense<0.000000e+00> : vector<1x128xf32>
    %92 = tpu.matmul %90, %1, %cst_22 {dimension_numbers = #tpu.dot_dimension_numbers<[1], [0], [0], [1], [0, 0, 1, 1], [], []>} : vector<1x32xf32>, vector<32x128xf32>, vector<1x128xf32> -> vector<1x128xf32>
    %93 = arith.addf %91, %92 : vector<1x128xf32>
    %94 = arith.mulf %21, %93 : vector<1x128xf32>
    %95 = math.tanh %94 : vector<1x128xf32>
    %96 = arith.mulf %21, %95 : vector<1x128xf32>
    %97 = arith.addf %96, %24 : vector<1x128xf32>
    %98 = vector.extract_strided_slice %97 {offsets = [0, 0], sizes = [1, 32], strides = [1, 1]} : vector<1x128xf32> to vector<1x32xf32>
    %99 = vector.extract_strided_slice %97 {offsets = [0, 32], sizes = [1, 32], strides = [1, 1]} : vector<1x128xf32> to vector<1x32xf32>
    %100 = vector.extract_strided_slice %97 {offsets = [0, 64], sizes = [1, 32], strides = [1, 1]} : vector<1x128xf32> to vector<1x32xf32>
    %101 = vector.extract_strided_slice %97 {offsets = [0, 96], sizes = [1, 32], strides = [1, 1]} : vector<1x128xf32> to vector<1x32xf32>
    %102 = arith.mulf %99, %88 : vector<1x32xf32>
    %103 = arith.mulf %98, %100 : vector<1x32xf32>
    %104 = arith.addf %102, %103 : vector<1x32xf32>
    %105 = math.tanh %104 : vector<1x32xf32>
    %106 = arith.mulf %101, %105 : vector<1x32xf32>
    %107 = vector.extract_strided_slice %12 {offsets = [5, 0], sizes = [1, 128], strides = [1, 1]} : vector<8x128xf32> to vector<1x128xf32>
    %cst_23 = arith.constant dense<0.000000e+00> : vector<1x128xf32>
    %108 = tpu.matmul %106, %1, %cst_23 {dimension_numbers = #tpu.dot_dimension_numbers<[1], [0], [0], [1], [0, 0, 1, 1], [], []>} : vector<1x32xf32>, vector<32x128xf32>, vector<1x128xf32> -> vector<1x128xf32>
    %109 = arith.addf %107, %108 : vector<1x128xf32>
    %110 = arith.mulf %21, %109 : vector<1x128xf32>
    %111 = math.tanh %110 : vector<1x128xf32>
    %112 = arith.mulf %21, %111 : vector<1x128xf32>
    %113 = arith.addf %112, %24 : vector<1x128xf32>
    %114 = vector.extract_strided_slice %113 {offsets = [0, 0], sizes = [1, 32], strides = [1, 1]} : vector<1x128xf32> to vector<1x32xf32>
    %115 = vector.extract_strided_slice %113 {offsets = [0, 32], sizes = [1, 32], strides = [1, 1]} : vector<1x128xf32> to vector<1x32xf32>
    %116 = vector.extract_strided_slice %113 {offsets = [0, 64], sizes = [1, 32], strides = [1, 1]} : vector<1x128xf32> to vector<1x32xf32>
    %117 = vector.extract_strided_slice %113 {offsets = [0, 96], sizes = [1, 32], strides = [1, 1]} : vector<1x128xf32> to vector<1x32xf32>
    %118 = arith.mulf %115, %104 : vector<1x32xf32>
    %119 = arith.mulf %114, %116 : vector<1x32xf32>
    %120 = arith.addf %118, %119 : vector<1x32xf32>
    %121 = math.tanh %120 : vector<1x32xf32>
    %122 = arith.mulf %117, %121 : vector<1x32xf32>
    %123 = vector.extract_strided_slice %12 {offsets = [6, 0], sizes = [1, 128], strides = [1, 1]} : vector<8x128xf32> to vector<1x128xf32>
    %cst_24 = arith.constant dense<0.000000e+00> : vector<1x128xf32>
    %124 = tpu.matmul %122, %1, %cst_24 {dimension_numbers = #tpu.dot_dimension_numbers<[1], [0], [0], [1], [0, 0, 1, 1], [], []>} : vector<1x32xf32>, vector<32x128xf32>, vector<1x128xf32> -> vector<1x128xf32>
    %125 = arith.addf %123, %124 : vector<1x128xf32>
    %126 = arith.mulf %21, %125 : vector<1x128xf32>
    %127 = math.tanh %126 : vector<1x128xf32>
    %128 = arith.mulf %21, %127 : vector<1x128xf32>
    %129 = arith.addf %128, %24 : vector<1x128xf32>
    %130 = vector.extract_strided_slice %129 {offsets = [0, 0], sizes = [1, 32], strides = [1, 1]} : vector<1x128xf32> to vector<1x32xf32>
    %131 = vector.extract_strided_slice %129 {offsets = [0, 32], sizes = [1, 32], strides = [1, 1]} : vector<1x128xf32> to vector<1x32xf32>
    %132 = vector.extract_strided_slice %129 {offsets = [0, 64], sizes = [1, 32], strides = [1, 1]} : vector<1x128xf32> to vector<1x32xf32>
    %133 = vector.extract_strided_slice %129 {offsets = [0, 96], sizes = [1, 32], strides = [1, 1]} : vector<1x128xf32> to vector<1x32xf32>
    %134 = arith.mulf %131, %120 : vector<1x32xf32>
    %135 = arith.mulf %130, %132 : vector<1x32xf32>
    %136 = arith.addf %134, %135 : vector<1x32xf32>
    %137 = math.tanh %136 : vector<1x32xf32>
    %138 = arith.mulf %133, %137 : vector<1x32xf32>
    %139 = vector.extract_strided_slice %12 {offsets = [7, 0], sizes = [1, 128], strides = [1, 1]} : vector<8x128xf32> to vector<1x128xf32>
    %cst_25 = arith.constant dense<0.000000e+00> : vector<1x128xf32>
    %140 = tpu.matmul %138, %1, %cst_25 {dimension_numbers = #tpu.dot_dimension_numbers<[1], [0], [0], [1], [0, 0, 1, 1], [], []>} : vector<1x32xf32>, vector<32x128xf32>, vector<1x128xf32> -> vector<1x128xf32>
    %141 = arith.addf %139, %140 : vector<1x128xf32>
    %142 = arith.mulf %21, %141 : vector<1x128xf32>
    %143 = math.tanh %142 : vector<1x128xf32>
    %144 = arith.mulf %21, %143 : vector<1x128xf32>
    %145 = arith.addf %144, %24 : vector<1x128xf32>
    %146 = vector.extract_strided_slice %145 {offsets = [0, 0], sizes = [1, 32], strides = [1, 1]} : vector<1x128xf32> to vector<1x32xf32>
    %147 = vector.extract_strided_slice %145 {offsets = [0, 32], sizes = [1, 32], strides = [1, 1]} : vector<1x128xf32> to vector<1x32xf32>
    %148 = vector.extract_strided_slice %145 {offsets = [0, 64], sizes = [1, 32], strides = [1, 1]} : vector<1x128xf32> to vector<1x32xf32>
    %149 = vector.extract_strided_slice %145 {offsets = [0, 96], sizes = [1, 32], strides = [1, 1]} : vector<1x128xf32> to vector<1x32xf32>
    %150 = arith.mulf %147, %136 : vector<1x32xf32>
    %151 = arith.mulf %146, %148 : vector<1x32xf32>
    %152 = arith.addf %150, %151 : vector<1x32xf32>
    %153 = math.tanh %152 : vector<1x32xf32>
    %154 = arith.mulf %149, %153 : vector<1x32xf32>
    %155 = tpu.concatenate %42, %58, %74, %90, %106, %122, %138, %154 in 0 : vector<1x32xf32>, vector<1x32xf32>, vector<1x32xf32>, vector<1x32xf32>, vector<1x32xf32>, vector<1x32xf32>, vector<1x32xf32>, vector<1x32xf32> -> vector<8x32xf32>
    %cst_26 = arith.constant dense<0.000000e+00> : vector<8x128xf32>
    %156 = tpu.matmul %155, %3, %cst_26 {dimension_numbers = #tpu.dot_dimension_numbers<[1], [0], [0], [1], [0, 0, 1, 1], [], []>} : vector<8x32xf32>, vector<32x128xf32>, vector<8x128xf32> -> vector<8x128xf32>
    %157 = vector.broadcast %4 : vector<1x128xf32> to vector<8x128xf32>
    %158 = arith.addf %156, %157 : vector<8x128xf32>
    %cst_27 = arith.constant 0.000000e+00 : f32
    %159 = vector.broadcast %cst_27 : f32 to vector<8x128xf32>
    %160 = arith.maximumf %158, %159 : vector<8x128xf32>
    %cst_28 = arith.constant dense<0.000000e+00> : vector<8x128xf32>
    %161 = tpu.matmul %160, %5, %cst_28 {dimension_numbers = #tpu.dot_dimension_numbers<[1], [0], [0], [1], [0, 0, 1, 1], [], []>} : vector<8x128xf32>, vector<128x128xf32>, vector<8x128xf32> -> vector<8x128xf32>
    %162 = vector.broadcast %6 : vector<1x128xf32> to vector<8x128xf32>
    %163 = arith.addf %161, %162 : vector<8x128xf32>
    %cst_29 = arith.constant 0.000000e+00 : f32
    %164 = vector.broadcast %cst_29 : f32 to vector<8x128xf32>
    %165 = arith.maximumf %163, %164 : vector<8x128xf32>
    %cst_30 = arith.constant dense<0.000000e+00> : vector<8x128xf32>
    %166 = tpu.matmul %165, %7, %cst_30 {dimension_numbers = #tpu.dot_dimension_numbers<[1], [0], [0], [1], [0, 0, 1, 1], [], []>} : vector<8x128xf32>, vector<128x128xf32>, vector<8x128xf32> -> vector<8x128xf32>
    %167 = vector.broadcast %8 : vector<1x128xf32> to vector<8x128xf32>
    %168 = arith.addf %166, %167 : vector<8x128xf32>
    %c0_31 = arith.constant 0 : index
    %c0_32 = arith.constant 0 : index
    %169 = vector.load %arg3[%c0_31, %c0_32] : memref<8x128xf32, #tpu.memory_space<vmem>>, vector<8x128xf32>
    tpu.vector_store %arg3[%c0_31, %c0_32], %168 {strides = array<i32>} : memref<8x128xf32, #tpu.memory_space<vmem>>, vector<8x128xf32>,
    %170 = tpu.concatenate %154, %152 in 0 : vector<1x32xf32>, vector<1x32xf32> -> vector<2x32xf32>
    %c0_33 = arith.constant 0 : index
    %c0_34 = arith.constant 0 : index
    %171 = vector.load %arg4[%c0_33, %c0_34] : memref<2x32xf32, #tpu.memory_space<vmem>>, vector<2x32xf32>
    tpu.vector_store %arg4[%c0_33, %c0_34], %170 {strides = array<i32>} : memref<2x32xf32, #tpu.memory_space<vmem>>, vector<2x32xf32>,
    return
  }
}

</mosaic_0001>

<llo_original>
// kernel: tpu_custom_call.1
$region0: #{tpu_custom_call.1}
  #allocation0 [shape = 'u32[]', space=smem, size = 0x4, offset = 0x4, fixed_abs, tag = 'smem constant byte address 0x4 - core index']
  #allocation1 [shape = 'u32[144,128]{1,0:T(1,128)}', space=vmem, size = 0x12000, scoped, tag = 'internal scratch']
  %s0 = inlined_call_operand.hbm [shape: f32[8,16], index: 0, kind: input, shape index: {}]
  %s1 = inlined_call_operand.vmem [shape: f32[2,32], index: 1, kind: input, shape index: {}]
  %s2 = inlined_call_operand.hbm [shape: f32[368,128], index: 2, kind: input, shape index: {}]
  %s3 = inlined_call_operand.hbm [shape: f32[8,128], index: 3, kind: output, shape index: {0}]
  %s4 = inlined_call_operand.hbm [shape: f32[2,32], index: 4, kind: output, shape index: {1}]
  %5 = xla_tuple %s3, %s4
  %s6 = sld [smem:[#allocation0]]
  $region38: #{tpu_custom_call.1} parent=0
    _
  %s8 = ssub.s32 1, %s6
  %s9 = scalar_select 0, %s8, %s6
  $region1: #{tpu_custom_call.1} parent=0
    #allocation2 [shape = 'u8[4096]{0}', space=vmem, size = 0x1000, scoped, tag = 'input window, operand 0, single buffered']
    #allocation3 [shape = 's32[1]{0}', space=sflag, size = 0x4, scoped, tag = 'scoped memory for tpu_custom_call.1']
    #allocation4 [shape = 's32[1]{0}', space=sflag, size = 0x4, scoped, tag = 'scoped memory for tpu_custom_call.1']
    #allocation5 [shape = 'u8[188416]{0}', space=vmem, size = 0x2e000, scoped, tag = 'input window, operand 2, single buffered']
    #allocation6 [shape = 's32[1]{0}', space=sflag, size = 0x4, scoped, tag = 'scoped memory for tpu_custom_call.1']
    #allocation7 [shape = 'u8[4096]{0}', space=vmem, size = 0x1000, scoped, tag = 'output window, operand 0, single buffered']
    #allocation8 [shape = 'u8[1024]{0}', space=vmem, size = 0x400, scoped, tag = 'output window, operand 1, single buffered']
    #allocation9 [shape = 's32[1]{0}', space=sflag, size = 0x4, scoped, tag = 'scoped memory for tpu_custom_call.1']
    %10 = vsyncpa [#allocation3], 0
    %11 = vsyncpa [#allocation6], 0
    %12 = vsyncpa [#allocation4], 0
    %13 = vsyncpa [#allocation9], 0
    // Predicated region
    $region2: #{tpu_custom_call.1} parent=1 // pred_check
      _
    $region3: #{tpu_custom_call.1} parent=1 // pred_check_branch
      %15 = sbr.rel (0) target = $region5
    $region4: #{tpu_custom_call.1} parent=1 // pred_region
      %s17 = ssub.s32 128, 128
      %18 = vsyncadd [#allocation3], %s17
      %s20 = sshll.u32 [#allocation2], 4
      %s21 = int_to_ptr.vmem [resolvable:$true] %s20
      %23 = dma.hbm_to_vmem [thread:$0]  %s0, 128, %s21, [#allocation3]
    $region5: #{tpu_custom_call.1} parent=1 // pred_fallthru
      _
    // Predicated region
    $region6: #{tpu_custom_call.1} parent=1 // pred_check
      _
    $region7: #{tpu_custom_call.1} parent=1 // pred_check_branch
      %25 = sbr.rel (0) target = $region9
    $region8: #{tpu_custom_call.1} parent=1 // pred_region
      _
    $region9: #{tpu_custom_call.1} parent=1 // pred_fallthru
      _
    // Predicated region
    $region10: #{tpu_custom_call.1} parent=1 // pred_check
      _
    $region11: #{tpu_custom_call.1} parent=1 // pred_check_branch
      %27 = sbr.rel (0) target = $region13
    $region12: #{tpu_custom_call.1} parent=1 // pred_region
      %s29 = ssub.s32 5888, 5888
      %30 = vsyncadd [#allocation6], %s29
      %s31 = sshll.u32 [#allocation5], 4
      %s32 = int_to_ptr.vmem [resolvable:$true] %s31
      %37 = dma.hbm_to_vmem [thread:$0]  %s2, 5888, %s32, [#allocation6], 128, 128, 8
    $region13: #{tpu_custom_call.1} parent=1 // pred_fallthru
      _
    // Predicated region
    $region14: #{tpu_custom_call.1} parent=1 // pred_check
      _
    $region15: #{tpu_custom_call.1} parent=1 // pred_check_branch
      %39 = sbr.rel (0) target = $region17
    $region16: #{tpu_custom_call.1} parent=1 // pred_region
      %40 = dma.done [#allocation3], 128
    $region17: #{tpu_custom_call.1} parent=1 // pred_fallthru
      _
    // Predicated region
    $region18: #{tpu_custom_call.1} parent=1 // pred_check
      _
    $region19: #{tpu_custom_call.1} parent=1 // pred_check_branch
      %42 = sbr.rel (0) target = $region21
    $region20: #{tpu_custom_call.1} parent=1 // pred_region
      %43 = dma.done [#allocation6], 5888
    $region21: #{tpu_custom_call.1} parent=1 // pred_fallthru
      _
    %v44 = vld [vmem:[#allocation5] sm:$0xff]
    %v45 = vld [vmem:[#allocation5 + $0x8] sm:$0xff]
    %v46 = vld [vmem:[#allocation5 + $0x10] sm:$0xff]
    %v47 = vld [vmem:[#allocation5 + $0x18] sm:$0xff]
    %v48 = vld [vmem:[#allocation5 + $0x20] sm:$0xff]
    %v49 = vld [vmem:[#allocation5 + $0x28] sm:$0xff]
    %v50 = vld [vmem:[#allocation5 + $0x30] sm:$0x1]
    %v51 = vld [vmem:[#allocation5 + $0x38] sm:$0xff]
    %v52 = vld [vmem:[#allocation5 + $0x40] sm:$0xff]
    %v53 = vld [vmem:[#allocation5 + $0x48] sm:$0xff]
    %v54 = vld [vmem:[#allocation5 + $0x50] sm:$0xff]
    %v55 = vld [vmem:[#allocation5 + $0x58] sm:$0x1]
    %v56 = vld [vmem:[#allocation5 + $0x60] sm:$0xff]
    %v57 = vld [vmem:[#allocation5 + $0x68] sm:$0xff]
    %v58 = vld [vmem:[#allocation5 + $0x70] sm:$0xff]
    %v59 = vld [vmem:[#allocation5 + $0x78] sm:$0xff]
    %v60 = vld [vmem:[#allocation5 + $0x80] sm:$0xff]
    %v61 = vld [vmem:[#allocation5 + $0x88] sm:$0xff]
    %v62 = vld [vmem:[#allocation5 + $0x90] sm:$0xff]
    %v63 = vld [vmem:[#allocation5 + $0x98] sm:$0xff]
    %v64 = vld [vmem:[#allocation5 + $0xa0] sm:$0xff]
    %v65 = vld [vmem:[#allocation5 + $0xa8] sm:$0xff]
    %v66 = vld [vmem:[#allocation5 + $0xb0] sm:$0xff]
    %v67 = vld [vmem:[#allocation5 + $0xb8] sm:$0xff]
    %v68 = vld [vmem:[#allocation5 + $0xc0] sm:$0xff]
    %v69 = vld [vmem:[#allocation5 + $0xc8] sm:$0xff]
    %v70 = vld [vmem:[#allocation5 + $0xd0] sm:$0xff]
    %v71 = vld [vmem:[#allocation5 + $0xd8] sm:$0xff]
    %v72 = vld [vmem:[#allocation5 + $0xe0] sm:$0x1]
    %v73 = vld [vmem:[#allocation5 + $0xe8] sm:$0xff]
    %v74 = vld [vmem:[#allocation5 + $0xf0] sm:$0xff]
    %v75 = vld [vmem:[#allocation5 + $0xf8] sm:$0xff]
    %v76 = vld [vmem:[#allocation5 + $0x100] sm:$0xff]
    %v77 = vld [vmem:[#allocation5 + $0x108] sm:$0xff]
    %v78 = vld [vmem:[#allocation5 + $0x110] sm:$0xff]
    %v79 = vld [vmem:[#allocation5 + $0x118] sm:$0xff]
    %v80 = vld [vmem:[#allocation5 + $0x120] sm:$0xff]
    %v81 = vld [vmem:[#allocation5 + $0x128] sm:$0xff]
    %v82 = vld [vmem:[#allocation5 + $0x130] sm:$0xff]
    %v83 = vld [vmem:[#allocation5 + $0x138] sm:$0xff]
    %v84 = vld [vmem:[#allocation5 + $0x140] sm:$0xff]
    %v85 = vld [vmem:[#allocation5 + $0x148] sm:$0xff]
    %v86 = vld [vmem:[#allocation5 + $0x150] sm:$0xff]
    %v87 = vld [vmem:[#allocation5 + $0x158] sm:$0xff]
    %v88 = vld [vmem:[#allocation5 + $0x160] sm:$0xff]
    %v89 = vld [vmem:[#allocation5 + $0x168] sm:$0x1]
    %v90 = vld [vmem:[#allocation2] sm:$0xff]
    %v91 = vlaneseq
    %v92 = vshrl.u32 %v91, 7
    %v93 = vsub.s32 0, %v92
    %v94 = vrot.slane %v50, %v93
    %vm95 = vcmask 130048
    %v97 = vsel %vm95, %v90, 0
    %99 = vmatprep.subr.mxu0 0.0
    %100 = vmatpush1.msra.mxu0 %v44
    %101 = vmatprep.subr.mxu0 0.0
    %102 = vmatpush1.msra.mxu0 %v45
    %103 = vmatprep.subr.mxu0 0.0
    %104 = vmatpush1.msra.mxu0 0.0
    %105 = vmatprep.subr.mxu0 0.0
    %106 = vmatpush1.msra.mxu0 0.0
    %107 = vmatprep.subr.mxu0 0.0
    %108 = vmatpush1.msra.mxu0 0.0
    %109 = vmatprep.subr.mxu0 0.0
    %110 = vmatpush1.msra.mxu0 0.0
    %111 = vmatprep.subr.mxu0 0.0
    %112 = vmatpush1.msra.mxu0 0.0
    %113 = vmatprep.subr.mxu0 0.0
    %114 = vmatpush1.msra.mxu0 0.0
    %115 = vmatprep.subr.mxu0 0.0
    %116 = vmatpush1.msra.mxu0 0.0
    %117 = vmatprep.subr.mxu0 0.0
    %118 = vmatpush1.msra.mxu0 0.0
    %119 = vmatprep.subr.mxu0 0.0
    %120 = vmatpush1.msra.mxu0 0.0
    %121 = vmatprep.subr.mxu0 0.0
    %122 = vmatpush1.msra.mxu0 0.0
    %123 = vmatprep.subr.mxu0 0.0
    %124 = vmatpush1.msra.mxu0 0.0
    %125 = vmatprep.subr.mxu0 0.0
    %126 = vmatpush1.msra.mxu0 0.0
    %127 = vmatprep.subr.mxu0 0.0
    %128 = vmatpush1.msra.mxu0 0.0
    %129 = vmatprep.subr.mxu0 0.0
    %130 = vmatpush1.msra.mxu0 0.0
    %131 = vmatprep.subr.mxu0 0.0
    %132 = vmatpush1.msra.mxu0 0.0
    %133 = vmatprep.subr.mxu0 0.0
    %134 = vmatpush1.msra.mxu0 0.0
    %135 = vmatprep.subr.mxu0 0.0
    %136 = vmatpush1.msra.mxu0 0.0
    %137 = vmatprep.subr.mxu0 0.0
    %138 = vmatpush1.msra.mxu0 0.0
    %139 = vmatprep.subr.mxu0 0.0
    %140 = vmatpush1.msra.mxu0 0.0
    %141 = vmatprep.subr.mxu0 0.0
    %142 = vmatpush1.msra.mxu0 0.0
    %143 = vmatprep.subr.mxu0 0.0
    %144 = vmatpush1.msra.mxu0 0.0
    %145 = vmatprep.subr.mxu0 0.0
    %146 = vmatpush1.msra.mxu0 0.0
    %147 = vmatprep.subr.mxu0 0.0
    %148 = vmatpush1.msra.mxu0 0.0
    %149 = vmatprep.subr.mxu0 0.0
    %150 = vmatpush1.msra.mxu0 0.0
    %151 = vmatprep.subr.mxu0 0.0
    %152 = vmatpush1.msra.mxu0 0.0
    %153 = vmatprep.subr.mxu0 0.0
    %154 = vmatpush1.msra.mxu0 0.0
    %155 = vmatprep.subr.mxu0 0.0
    %156 = vmatpush1.msra.mxu0 0.0
    %157 = vmatprep.subr.mxu0 0.0
    %158 = vmatpush1.msra.mxu0 0.0
    %159 = vmatprep.subr.mxu0 0.0
    %160 = vmatpush1.msra.mxu0 0.0
    %161 = vmatprep.subr.mxu0 0.0
    %162 = vmatpush1.msra.mxu0 0.0
    %163 = vmatprep.mubr.f32.mxu0 0.0
    %164 = vmatmul.mubr.f32.gmra.mrb[0].mxu0 %v97
    %v165 = vpop.f32.mrb[0].mxu0
    %v166 = vadd.f32 %v94, %v165
    %v167 = vpop.f32.mrb[0].mxu0
    %168 = vdwg.mxu0
    %v169 = vlaneseq
    %v170 = vand.u32 %v169, 127
    %vm171 = vcmp.ge.s32.totalorder %v170, 64
    %vm172 = vcmp.lt.s32.totalorder %v170, 96
    %vm173 = vmand %vm171, %vm172
    %v174 = vsel %vm173, 1.0, 0.5
    %v175 = vsel %vm173, 0.0, 0.5
    %v176 = vld [vmem:[%s1] sm:$0x1]
    %v177 = vld [vmem:[%s1 + $0x1] sm:$0x1]
    %vm178 = vcmask 261120
    %v180 = vsel %vm178, %v176, 0
    %182 = vmatprep.subr.mxu0 0.0
    %183 = vmatpush1.msra.mxu0 %v46
    %184 = vmatprep.subr.mxu0 0.0
    %185 = vmatpush1.msra.mxu0 %v47
    %186 = vmatprep.subr.mxu0 0.0
    %187 = vmatpush1.msra.mxu0 %v48
    %188 = vmatprep.subr.mxu0 0.0
    %189 = vmatpush1.msra.mxu0 %v49
    %190 = vmatprep.subr.mxu0 0.0
    %191 = vmatpush1.msra.mxu0 0.0
    %192 = vmatprep.subr.mxu0 0.0
    %193 = vmatpush1.msra.mxu0 0.0
    %194 = vmatprep.subr.mxu0 0.0
    %195 = vmatpush1.msra.mxu0 0.0
    %196 = vmatprep.subr.mxu0 0.0
    %197 = vmatpush1.msra.mxu0 0.0
    %198 = vmatprep.subr.mxu0 0.0
    %199 = vmatpush1.msra.mxu0 0.0
    %200 = vmatprep.subr.mxu0 0.0
    %201 = vmatpush1.msra.mxu0 0.0
    %202 = vmatprep.subr.mxu0 0.0
    %203 = vmatpush1.msra.mxu0 0.0
    %204 = vmatprep.subr.mxu0 0.0
    %205 = vmatpush1.msra.mxu0 0.0
    %206 = vmatprep.subr.mxu0 0.0
    %207 = vmatpush1.msra.mxu0 0.0
    %208 = vmatprep.subr.mxu0 0.0
    %209 = vmatpush1.msra.mxu0 0.0
    %210 = vmatprep.subr.mxu0 0.0
    %211 = vmatpush1.msra.mxu0 0.0
    %212 = vmatprep.subr.mxu0 0.0
    %213 = vmatpush1.msra.mxu0 0.0
    %214 = vmatprep.subr.mxu0 0.0
    %215 = vmatpush1.msra.mxu0 0.0
    %216 = vmatprep.subr.mxu0 0.0
    %217 = vmatpush1.msra.mxu0 0.0
    %218 = vmatprep.subr.mxu0 0.0
    %219 = vmatpush1.msra.mxu0 0.0
    %220 = vmatprep.subr.mxu0 0.0
    %221 = vmatpush1.msra.mxu0 0.0
    %222 = vmatprep.subr.mxu0 0.0
    %223 = vmatpush1.msra.mxu0 0.0
    %224 = vmatprep.subr.mxu0 0.0
    %225 = vmatpush1.msra.mxu0 0.0
    %226 = vmatprep.subr.mxu0 0.0
    %227 = vmatpush1.msra.mxu0 0.0
    %228 = vmatprep.subr.mxu0 0.0
    %229 = vmatpush1.msra.mxu0 0.0
    %230 = vmatprep.subr.mxu0 0.0
    %231 = vmatpush1.msra.mxu0 0.0
    %232 = vmatprep.subr.mxu0 0.0
    %233 = vmatpush1.msra.mxu0 0.0
    %234 = vmatprep.subr.mxu0 0.0
    %235 = vmatpush1.msra.mxu0 0.0
    %236 = vmatprep.subr.mxu0 0.0
    %237 = vmatpush1.msra.mxu0 0.0
    %238 = vmatprep.subr.mxu0 0.0
    %239 = vmatpush1.msra.mxu0 0.0
    %240 = vmatprep.subr.mxu0 0.0
    %241 = vmatpush1.msra.mxu0 0.0
    %242 = vmatprep.subr.mxu0 0.0
    %243 = vmatpush1.msra.mxu0 0.0
    %244 = vmatprep.subr.mxu0 0.0
    %245 = vmatpush1.msra.mxu0 0.0
    %246 = vmatprep.mubr.f32.mxu0 0.0
    %247 = vmatmul.mubr.f32.gmra.mrb[0].mxu0 %v180
    %v248 = vpop.f32.mrb[0].mxu0
    %v249 = vadd.f32 0.0, %v248
    %v250 = vpop.f32.mrb[0].mxu0
    %251 = vdwg.mxu0
    %v252 = vadd.f32 %v166, %v249
    %v253 = vmul.f32 %v174, %v252
    %v254 = vtanh.pop %v253
    %v255 = vmul.f32 %v174, %v254
    %v256 = vadd.f32 %v255, %v175
    %258 = vrot.lane.b32.xlu0 %v177, 32
    %v259 = vpop.permute.xlu0 %258
    %v261 = vmul.f32 %v256, %v259
    %263 = vrot.lane.b32.xlu0 %v256, 64
    %v264 = vpop.permute.xlu0 %263
    %v266 = vmul.f32 %v256, %v264
    %268 = vrot.lane.b32.xlu0 %v266, 32
    %v269 = vpop.permute.xlu0 %268
    %v271 = vadd.f32 %v261, %v269
    %v272 = vtanh.pop %v271
    %274 = vrot.lane.b32.xlu0 %v272, 64
    %v275 = vpop.permute.xlu0 %274
    %v277 = vmul.f32 %v256, %v275
    %279 = vrot.lane.b32.xlu0 %v277, 32
    %v280 = vpop.permute.xlu0 %279
    %v281 = vsel %vm178, %v280, 0
    %283 = vmatprep.subr.mxu0 0.0
    %284 = vmatpush1.msra.mxu0 %v46
    %285 = vmatprep.subr.mxu0 0.0
    %286 = vmatpush1.msra.mxu0 %v47
    %287 = vmatprep.subr.mxu0 0.0
    %288 = vmatpush1.msra.mxu0 %v48
    %289 = vmatprep.subr.mxu0 0.0
    %290 = vmatpush1.msra.mxu0 %v49
    %291 = vmatprep.subr.mxu0 0.0
    %292 = vmatpush1.msra.mxu0 0.0
    %293 = vmatprep.subr.mxu0 0.0
    %294 = vmatpush1.msra.mxu0 0.0
    %295 = vmatprep.subr.mxu0 0.0
    %296 = vmatpush1.msra.mxu0 0.0
    %297 = vmatprep.subr.mxu0 0.0
    %298 = vmatpush1.msra.mxu0 0.0
    %299 = vmatprep.subr.mxu0 0.0
    %300 = vmatpush1.msra.mxu0 0.0
    %301 = vmatprep.subr.mxu0 0.0
    %302 = vmatpush1.msra.mxu0 0.0
    %303 = vmatprep.subr.mxu0 0.0
    %304 = vmatpush1.msra.mxu0 0.0
    %305 = vmatprep.subr.mxu0 0.0
    %306 = vmatpush1.msra.mxu0 0.0
    %307 = vmatprep.subr.mxu0 0.0
    %308 = vmatpush1.msra.mxu0 0.0
    %309 = vmatprep.subr.mxu0 0.0
    %310 = vmatpush1.msra.mxu0 0.0
    %311 = vmatprep.subr.mxu0 0.0
    %312 = vmatpush1.msra.mxu0 0.0
    %313 = vmatprep.subr.mxu0 0.0
    %314 = vmatpush1.msra.mxu0 0.0
    %315 = vmatprep.subr.mxu0 0.0
    %316 = vmatpush1.msra.mxu0 0.0
    %317 = vmatprep.subr.mxu0 0.0
    %318 = vmatpush1.msra.mxu0 0.0
    %319 = vmatprep.subr.mxu0 0.0
    %320 = vmatpush1.msra.mxu0 0.0
    %321 = vmatprep.subr.mxu0 0.0
    %322 = vmatpush1.msra.mxu0 0.0
    %323 = vmatprep.subr.mxu0 0.0
    %324 = vmatpush1.msra.mxu0 0.0
    %325 = vmatprep.subr.mxu0 0.0
    %326 = vmatpush1.msra.mxu0 0.0
    %327 = vmatprep.subr.mxu0 0.0
    %328 = vmatpush1.msra.mxu0 0.0
    %329 = vmatprep.subr.mxu0 0.0
    %330 = vmatpush1.msra.mxu0 0.0
    %331 = vmatprep.subr.mxu0 0.0
    %332 = vmatpush1.msra.mxu0 0.0
    %333 = vmatprep.subr.mxu0 0.0
    %334 = vmatpush1.msra.mxu0 0.0
    %335 = vmatprep.subr.mxu0 0.0
    %336 = vmatpush1.msra.mxu0 0.0
    %337 = vmatprep.subr.mxu0 0.0
    %338 = vmatpush1.msra.mxu0 0.0
    %339 = vmatprep.subr.mxu0 0.0
    %340 = vmatpush1.msra.mxu0 0.0
    %341 = vmatprep.subr.mxu0 0.0
    %342 = vmatpush1.msra.mxu0 0.0
    %343 = vmatprep.subr.mxu0 0.0
    %344 = vmatpush1.msra.mxu0 0.0
    %345 = vmatprep.subr.mxu0 0.0
    %346 = vmatpush1.msra.mxu0 0.0
    %347 = vmatprep.mubr.f32.mxu0 0.0
    %348 = vmatmul.mubr.f32.gmra.mrb[0].mxu0 %v281
    %v349 = vpop.f32.mrb[0].mxu0
    %v350 = vadd.f32 0.0, %v349
    %v351 = vpop.f32.mrb[0].mxu0
    %352 = vdwg.mxu0
    %v354 = vrot.slane %v350, 7
    %v356 = vadd.f32 %v166, %v354
    %v357 = vmul.f32 %v174, %v356
    %v358 = vtanh.pop %v357
    %v359 = vmul.f32 %v174, %v358
    %v360 = vadd.f32 %v359, %v175
    %v362 = vrot.slane %v271, 7
    %v364 = vmul.f32 %v360, %v362
    %366 = vrot.lane.b32.xlu0 %v360, 64
    %v367 = vpop.permute.xlu0 %366
    %v369 = vmul.f32 %v360, %v367
    %371 = vrot.lane.b32.xlu0 %v369, 32
    %v372 = vpop.permute.xlu0 %371
    %v374 = vadd.f32 %v364, %v372
    %v375 = vtanh.pop %v374
    %377 = vrot.lane.b32.xlu0 %v375, 64
    %v378 = vpop.permute.xlu0 %377
    %v380 = vmul.f32 %v360, %v378
    %v382 = vrot.slane %v380, 1
    %383 = vrot.lane.b32.xlu0 %v382, 32
    %v384 = vpop.permute.xlu0 %383
    %v385 = vsel %vm178, %v384, 0
    %387 = vmatprep.subr.mxu0 0.0
    %388 = vmatpush1.msra.mxu0 %v46
    %389 = vmatprep.subr.mxu0 0.0
    %390 = vmatpush1.msra.mxu0 %v47
    %391 = vmatprep.subr.mxu0 0.0
    %392 = vmatpush1.msra.mxu0 %v48
    %393 = vmatprep.subr.mxu0 0.0
    %394 = vmatpush1.msra.mxu0 %v49
    %395 = vmatprep.subr.mxu0 0.0
    %396 = vmatpush1.msra.mxu0 0.0
    %397 = vmatprep.subr.mxu0 0.0
    %398 = vmatpush1.msra.mxu0 0.0
    %399 = vmatprep.subr.mxu0 0.0
    %400 = vmatpush1.msra.mxu0 0.0
    %401 = vmatprep.subr.mxu0 0.0
    %402 = vmatpush1.msra.mxu0 0.0
    %403 = vmatprep.subr.mxu0 0.0
    %404 = vmatpush1.msra.mxu0 0.0
    %405 = vmatprep.subr.mxu0 0.0
    %406 = vmatpush1.msra.mxu0 0.0
    %407 = vmatprep.subr.mxu0 0.0
    %408 = vmatpush1.msra.mxu0 0.0
    %409 = vmatprep.subr.mxu0 0.0
    %410 = vmatpush1.msra.mxu0 0.0
    %411 = vmatprep.subr.mxu0 0.0
    %412 = vmatpush1.msra.mxu0 0.0
    %413 = vmatprep.subr.mxu0 0.0
    %414 = vmatpush1.msra.mxu0 0.0
    %415 = vmatprep.subr.mxu0 0.0
    %416 = vmatpush1.msra.mxu0 0.0
    %417 = vmatprep.subr.mxu0 0.0
    %418 = vmatpush1.msra.mxu0 0.0
    %419 = vmatprep.subr.mxu0 0.0
    %420 = vmatpush1.msra.mxu0 0.0
    %421 = vmatprep.subr.mxu0 0.0
    %422 = vmatpush1.msra.mxu0 0.0
    %423 = vmatprep.subr.mxu0 0.0
    %424 = vmatpush1.msra.mxu0 0.0
    %425 = vmatprep.subr.mxu0 0.0
    %426 = vmatpush1.msra.mxu0 0.0
    %427 = vmatprep.subr.mxu0 0.0
    %428 = vmatpush1.msra.mxu0 0.0
    %429 = vmatprep.subr.mxu0 0.0
    %430 = vmatpush1.msra.mxu0 0.0
    %431 = vmatprep.subr.mxu0 0.0
    %432 = vmatpush1.msra.mxu0 0.0
    %433 = vmatprep.subr.mxu0 0.0
    %434 = vmatpush1.msra.mxu0 0.0
    %435 = vmatprep.subr.mxu0 0.0
    %436 = vmatpush1.msra.mxu0 0.0
    %437 = vmatprep.subr.mxu0 0.0
    %438 = vmatpush1.msra.mxu0 0.0
    %439 = vmatprep.subr.mxu0 0.0
    %440 = vmatpush1.msra.mxu0 0.0
    %441 = vmatprep.subr.mxu0 0.0
    %442 = vmatpush1.msra.mxu0 0.0
    %443 = vmatprep.subr.mxu0 0.0
    %444 = vmatpush1.msra.mxu0 0.0
    %445 = vmatprep.subr.mxu0 0.0
    %446 = vmatpush1.msra.mxu0 0.0
    %447 = vmatprep.subr.mxu0 0.0
    %448 = vmatpush1.msra.mxu0 0.0
    %449 = vmatprep.subr.mxu0 0.0
    %450 = vmatpush1.msra.mxu0 0.0
    %451 = vmatprep.mubr.f32.mxu0 0.0
    %452 = vmatmul.mubr.f32.gmra.mrb[0].mxu0 %v385
    %v453 = vpop.f32.mrb[0].mxu0
    %v454 = vadd.f32 0.0, %v453
    %v455 = vpop.f32.mrb[0].mxu0
    %456 = vdwg.mxu0
    %v458 = vrot.slane %v454, 6
    %v460 = vadd.f32 %v166, %v458
    %v461 = vmul.f32 %v174, %v460
    %v462 = vtanh.pop %v461
    %v463 = vmul.f32 %v174, %v462
    %v464 = vadd.f32 %v463, %v175
    %v466 = vrot.slane %v374, 7
    %v468 = vmul.f32 %v464, %v466
    %470 = vrot.lane.b32.xlu0 %v464, 64
    %v471 = vpop.permute.xlu0 %470
    %v473 = vmul.f32 %v464, %v471
    %475 = vrot.lane.b32.xlu0 %v473, 32
    %v476 = vpop.permute.xlu0 %475
    %v478 = vadd.f32 %v468, %v476
    %v479 = vtanh.pop %v478
    %481 = vrot.lane.b32.xlu0 %v479, 64
    %v482 = vpop.permute.xlu0 %481
    %v484 = vmul.f32 %v464, %v482
    %v486 = vrot.slane %v484, 2
    %487 = vrot.lane.b32.xlu0 %v486, 32
    %v488 = vpop.permute.xlu0 %487
    %v489 = vsel %vm178, %v488, 0
    %491 = vmatprep.subr.mxu0 0.0
    %492 = vmatpush1.msra.mxu0 %v46
    %493 = vmatprep.subr.mxu0 0.0
    %494 = vmatpush1.msra.mxu0 %v47
    %495 = vmatprep.subr.mxu0 0.0
    %496 = vmatpush1.msra.mxu0 %v48
    %497 = vmatprep.subr.mxu0 0.0
    %498 = vmatpush1.msra.mxu0 %v49
    %499 = vmatprep.subr.mxu0 0.0
    %500 = vmatpush1.msra.mxu0 0.0
    %501 = vmatprep.subr.mxu0 0.0
    %502 = vmatpush1.msra.mxu0 0.0
    %503 = vmatprep.subr.mxu0 0.0
    %504 = vmatpush1.msra.mxu0 0.0
    %505 = vmatprep.subr.mxu0 0.0
    %506 = vmatpush1.msra.mxu0 0.0
    %507 = vmatprep.subr.mxu0 0.0
    %508 = vmatpush1.msra.mxu0 0.0
    %509 = vmatprep.subr.mxu0 0.0
    %510 = vmatpush1.msra.mxu0 0.0
    %511 = vmatprep.subr.mxu0 0.0
    %512 = vmatpush1.msra.mxu0 0.0
    %513 = vmatprep.subr.mxu0 0.0
    %514 = vmatpush1.msra.mxu0 0.0
    %515 = vmatprep.subr.mxu0 0.0
    %516 = vmatpush1.msra.mxu0 0.0
    %517 = vmatprep.subr.mxu0 0.0
    %518 = vmatpush1.msra.mxu0 0.0
    %519 = vmatprep.subr.mxu0 0.0
    %520 = vmatpush1.msra.mxu0 0.0
    %521 = vmatprep.subr.mxu0 0.0
    %522 = vmatpush1.msra.mxu0 0.0
    %523 = vmatprep.subr.mxu0 0.0
    %524 = vmatpush1.msra.mxu0 0.0
    %525 = vmatprep.subr.mxu0 0.0
    %526 = vmatpush1.msra.mxu0 0.0
    %527 = vmatprep.subr.mxu0 0.0
    %528 = vmatpush1.msra.mxu0 0.0
    %529 = vmatprep.subr.mxu0 0.0
    %530 = vmatpush1.msra.mxu0 0.0
    %531 = vmatprep.subr.mxu0 0.0
    %532 = vmatpush1.msra.mxu0 0.0
    %533 = vmatprep.subr.mxu0 0.0
    %534 = vmatpush1.msra.mxu0 0.0
    %535 = vmatprep.subr.mxu0 0.0
    %536 = vmatpush1.msra.mxu0 0.0
    %537 = vmatprep.subr.mxu0 0.0
    %538 = vmatpush1.msra.mxu0 0.0
    %539 = vmatprep.subr.mxu0 0.0
    %540 = vmatpush1.msra.mxu0 0.0
    %541 = vmatprep.subr.mxu0 0.0
    %542 = vmatpush1.msra.mxu0 0.0
    %543 = vmatprep.subr.mxu0 0.0
    %544 = vmatpush1.msra.mxu0 0.0
    %545 = vmatprep.subr.mxu0 0.0
    %546 = vmatpush1.msra.mxu0 0.0
    %547 = vmatprep.subr.mxu0 0.0
    %548 = vmatpush1.msra.mxu0 0.0
    %549 = vmatprep.subr.mxu0 0.0
    %550 = vmatpush1.msra.mxu0 0.0
    %551 = vmatprep.subr.mxu0 0.0
    %552 = vmatpush1.msra.mxu0 0.0
    %553 = vmatprep.subr.mxu0 0.0
    %554 = vmatpush1.msra.mxu0 0.0
    %555 = vmatprep.mubr.f32.mxu0 0.0
    %556 = vmatmul.mubr.f32.gmra.mrb[0].mxu0 %v489
    %v557 = vpop.f32.mrb[0].mxu0
    %v558 = vadd.f32 0.0, %v557
    %v559 = vpop.f32.mrb[0].mxu0
    %560 = vdwg.mxu0
    %v562 = vrot.slane %v558, 5
    %v564 = vadd.f32 %v166, %v562
    %v565 = vmul.f32 %v174, %v564
    %v566 = vtanh.pop %v565
    %v567 = vmul.f32 %v174, %v566
    %v568 = vadd.f32 %v567, %v175
    %v570 = vrot.slane %v478, 7
    %v572 = vmul.f32 %v568, %v570
    %574 = vrot.lane.b32.xlu0 %v568, 64
    %v575 = vpop.permute.xlu0 %574
    %v577 = vmul.f32 %v568, %v575
    %579 = vrot.lane.b32.xlu0 %v577, 32
    %v580 = vpop.permute.xlu0 %579
    %v582 = vadd.f32 %v572, %v580
    %v583 = vtanh.pop %v582
    %585 = vrot.lane.b32.xlu0 %v583, 64
    %v586 = vpop.permute.xlu0 %585
    %v588 = vmul.f32 %v568, %v586
    %v590 = vrot.slane %v588, 3
    %591 = vrot.lane.b32.xlu0 %v590, 32
    %v592 = vpop.permute.xlu0 %591
    %v593 = vsel %vm178, %v592, 0
    %595 = vmatprep.subr.mxu0 0.0
    %596 = vmatpush1.msra.mxu0 %v46
    %597 = vmatprep.subr.mxu0 0.0
    %598 = vmatpush1.msra.mxu0 %v47
    %599 = vmatprep.subr.mxu0 0.0
    %600 = vmatpush1.msra.mxu0 %v48
    %601 = vmatprep.subr.mxu0 0.0
    %602 = vmatpush1.msra.mxu0 %v49
    %603 = vmatprep.subr.mxu0 0.0
    %604 = vmatpush1.msra.mxu0 0.0
    %605 = vmatprep.subr.mxu0 0.0
    %606 = vmatpush1.msra.mxu0 0.0
    %607 = vmatprep.subr.mxu0 0.0
    %608 = vmatpush1.msra.mxu0 0.0
    %609 = vmatprep.subr.mxu0 0.0
    %610 = vmatpush1.msra.mxu0 0.0
    %611 = vmatprep.subr.mxu0 0.0
    %612 = vmatpush1.msra.mxu0 0.0
    %613 = vmatprep.subr.mxu0 0.0
    %614 = vmatpush1.msra.mxu0 0.0
    %615 = vmatprep.subr.mxu0 0.0
    %616 = vmatpush1.msra.mxu0 0.0
    %617 = vmatprep.subr.mxu0 0.0
    %618 = vmatpush1.msra.mxu0 0.0
    %619 = vmatprep.subr.mxu0 0.0
    %620 = vmatpush1.msra.mxu0 0.0
    %621 = vmatprep.subr.mxu0 0.0
    %622 = vmatpush1.msra.mxu0 0.0
    %623 = vmatprep.subr.mxu0 0.0
    %624 = vmatpush1.msra.mxu0 0.0
    %625 = vmatprep.subr.mxu0 0.0
    %626 = vmatpush1.msra.mxu0 0.0
    %627 = vmatprep.subr.mxu0 0.0
    %628 = vmatpush1.msra.mxu0 0.0
    %629 = vmatprep.subr.mxu0 0.0
    %630 = vmatpush1.msra.mxu0 0.0
    %631 = vmatprep.subr.mxu0 0.0
    %632 = vmatpush1.msra.mxu0 0.0
    %633 = vmatprep.subr.mxu0 0.0
    %634 = vmatpush1.msra.mxu0 0.0
    %635 = vmatprep.subr.mxu0 0.0
    %636 = vmatpush1.msra.mxu0 0.0
    %637 = vmatprep.subr.mxu0 0.0
    %638 = vmatpush1.msra.mxu0 0.0
    %639 = vmatprep.subr.mxu0 0.0
    %640 = vmatpush1.msra.mxu0 0.0
    %641 = vmatprep.subr.mxu0 0.0
    %642 = vmatpush1.msra.mxu0 0.0
    %643 = vmatprep.subr.mxu0 0.0
    %644 = vmatpush1.msra.mxu0 0.0
    %645 = vmatprep.subr.mxu0 0.0
    %646 = vmatpush1.msra.mxu0 0.0
    %647 = vmatprep.subr.mxu0 0.0
    %648 = vmatpush1.msra.mxu0 0.0
    %649 = vmatprep.subr.mxu0 0.0
    %650 = vmatpush1.msra.mxu0 0.0
    %651 = vmatprep.subr.mxu0 0.0
    %652 = vmatpush1.msra.mxu0 0.0
    %653 = vmatprep.subr.mxu0 0.0
    %654 = vmatpush1.msra.mxu0 0.0
    %655 = vmatprep.subr.mxu0 0.0
    %656 = vmatpush1.msra.mxu0 0.0
    %657 = vmatprep.subr.mxu0 0.0
    %658 = vmatpush1.msra.mxu0 0.0
    %659 = vmatprep.mubr.f32.mxu0 0.0
    %660 = vmatmul.mubr.f32.gmra.mrb[0].mxu0 %v593
    %v661 = vpop.f32.mrb[0].mxu0
    %v662 = vadd.f32 0.0, %v661
    %v663 = vpop.f32.mrb[0].mxu0
    %664 = vdwg.mxu0
    %v666 = vrot.slane %v662, 4
    %v668 = vadd.f32 %v166, %v666
    %v669 = vmul.f32 %v174, %v668
    %v670 = vtanh.pop %v669
    %v671 = vmul.f32 %v174, %v670
    %v672 = vadd.f32 %v671, %v175
    %v674 = vrot.slane %v582, 7
    %v676 = vmul.f32 %v672, %v674
    %678 = vrot.lane.b32.xlu0 %v672, 64
    %v679 = vpop.permute.xlu0 %678
    %v681 = vmul.f32 %v672, %v679
    %683 = vrot.lane.b32.xlu0 %v681, 32
    %v684 = vpop.permute.xlu0 %683
    %v686 = vadd.f32 %v676, %v684
    %v687 = vtanh.pop %v686
    %689 = vrot.lane.b32.xlu0 %v687, 64
    %v690 = vpop.permute.xlu0 %689
    %v692 = vmul.f32 %v672, %v690
    %v694 = vrot.slane %v692, 4
    %695 = vrot.lane.b32.xlu0 %v694, 32
    %v696 = vpop.permute.xlu0 %695
    %v697 = vsel %vm178, %v696, 0
    %699 = vmatprep.subr.mxu0 0.0
    %700 = vmatpush1.msra.mxu0 %v46
    %701 = vmatprep.subr.mxu0 0.0
    %702 = vmatpush1.msra.mxu0 %v47
    %703 = vmatprep.subr.mxu0 0.0
    %704 = vmatpush1.msra.mxu0 %v48
    %705 = vmatprep.subr.mxu0 0.0
    %706 = vmatpush1.msra.mxu0 %v49
    %707 = vmatprep.subr.mxu0 0.0
    %708 = vmatpush1.msra.mxu0 0.0
    %709 = vmatprep.subr.mxu0 0.0
    %710 = vmatpush1.msra.mxu0 0.0
    %711 = vmatprep.subr.mxu0 0.0
    %712 = vmatpush1.msra.mxu0 0.0
    %713 = vmatprep.subr.mxu0 0.0
    %714 = vmatpush1.msra.mxu0 0.0
    %715 = vmatprep.subr.mxu0 0.0
    %716 = vmatpush1.msra.mxu0 0.0
    %717 = vmatprep.subr.mxu0 0.0
    %718 = vmatpush1.msra.mxu0 0.0
    %719 = vmatprep.subr.mxu0 0.0
    %720 = vmatpush1.msra.mxu0 0.0
    %721 = vmatprep.subr.mxu0 0.0
    %722 = vmatpush1.msra.mxu0 0.0
    %723 = vmatprep.subr.mxu0 0.0
    %724 = vmatpush1.msra.mxu0 0.0
    %725 = vmatprep.subr.mxu0 0.0
    %726 = vmatpush1.msra.mxu0 0.0
    %727 = vmatprep.subr.mxu0 0.0
    %728 = vmatpush1.msra.mxu0 0.0
    %729 = vmatprep.subr.mxu0 0.0
    %730 = vmatpush1.msra.mxu0 0.0
    %731 = vmatprep.subr.mxu0 0.0
    %732 = vmatpush1.msra.mxu0 0.0
    %733 = vmatprep.subr.mxu0 0.0
    %734 = vmatpush1.msra.mxu0 0.0
    %735 = vmatprep.subr.mxu0 0.0
    %736 = vmatpush1.msra.mxu0 0.0
    %737 = vmatprep.subr.mxu0 0.0
    %738 = vmatpush1.msra.mxu0 0.0
    %739 = vmatprep.subr.mxu0 0.0
    %740 = vmatpush1.msra.mxu0 0.0
    %741 = vmatprep.subr.mxu0 0.0
    %742 = vmatpush1.msra.mxu0 0.0
    %743 = vmatprep.subr.mxu0 0.0
    %744 = vmatpush1.msra.mxu0 0.0
    %745 = vmatprep.subr.mxu0 0.0
    %746 = vmatpush1.msra.mxu0 0.0
    %747 = vmatprep.subr.mxu0 0.0
    %748 = vmatpush1.msra.mxu0 0.0
    %749 = vmatprep.subr.mxu0 0.0
    %750 = vmatpush1.msra.mxu0 0.0
    %751 = vmatprep.subr.mxu0 0.0
    %752 = vmatpush1.msra.mxu0 0.0
    %753 = vmatprep.subr.mxu0 0.0
    %754 = vmatpush1.msra.mxu0 0.0
    %755 = vmatprep.subr.mxu0 0.0
    %756 = vmatpush1.msra.mxu0 0.0
    %757 = vmatprep.subr.mxu0 0.0
    %758 = vmatpush1.msra.mxu0 0.0
    %759 = vmatprep.subr.mxu0 0.0
    %760 = vmatpush1.msra.mxu0 0.0
    %761 = vmatprep.subr.mxu0 0.0
    %762 = vmatpush1.msra.mxu0 0.0
    %763 = vmatprep.mubr.f32.mxu0 0.0
    %764 = vmatmul.mubr.f32.gmra.mrb[0].mxu0 %v697
    %v765 = vpop.f32.mrb[0].mxu0
    %v766 = vadd.f32 0.0, %v765
    %v767 = vpop.f32.mrb[0].mxu0
    %768 = vdwg.mxu0
    %v770 = vrot.slane %v766, 3
    %v772 = vadd.f32 %v166, %v770
    %v773 = vmul.f32 %v174, %v772
    %v774 = vtanh.pop %v773
    %v775 = vmul.f32 %v174, %v774
    %v776 = vadd.f32 %v775, %v175
    %v778 = vrot.slane %v686, 7
    %v780 = vmul.f32 %v776, %v778
    %782 = vrot.lane.b32.xlu0 %v776, 64
    %v783 = vpop.permute.xlu0 %782
    %v785 = vmul.f32 %v776, %v783
    %787 = vrot.lane.b32.xlu0 %v785, 32
    %v788 = vpop.permute.xlu0 %787
    %v790 = vadd.f32 %v780, %v788
    %v791 = vtanh.pop %v790
    %793 = vrot.lane.b32.xlu0 %v791, 64
    %v794 = vpop.permute.xlu0 %793
    %v796 = vmul.f32 %v776, %v794
    %v798 = vrot.slane %v796, 5
    %799 = vrot.lane.b32.xlu0 %v798, 32
    %v800 = vpop.permute.xlu0 %799
    %v801 = vsel %vm178, %v800, 0
    %803 = vmatprep.subr.mxu0 0.0
    %804 = vmatpush1.msra.mxu0 %v46
    %805 = vmatprep.subr.mxu0 0.0
    %806 = vmatpush1.msra.mxu0 %v47
    %807 = vmatprep.subr.mxu0 0.0
    %808 = vmatpush1.msra.mxu0 %v48
    %809 = vmatprep.subr.mxu0 0.0
    %810 = vmatpush1.msra.mxu0 %v49
    %811 = vmatprep.subr.mxu0 0.0
    %812 = vmatpush1.msra.mxu0 0.0
    %813 = vmatprep.subr.mxu0 0.0
    %814 = vmatpush1.msra.mxu0 0.0
    %815 = vmatprep.subr.mxu0 0.0
    %816 = vmatpush1.msra.mxu0 0.0
    %817 = vmatprep.subr.mxu0 0.0
    %818 = vmatpush1.msra.mxu0 0.0
    %819 = vmatprep.subr.mxu0 0.0
    %820 = vmatpush1.msra.mxu0 0.0
    %821 = vmatprep.subr.mxu0 0.0
    %822 = vmatpush1.msra.mxu0 0.0
    %823 = vmatprep.subr.mxu0 0.0
    %824 = vmatpush1.msra.mxu0 0.0
    %825 = vmatprep.subr.mxu0 0.0
    %826 = vmatpush1.msra.mxu0 0.0
    %827 = vmatprep.subr.mxu0 0.0
    %828 = vmatpush1.msra.mxu0 0.0
    %829 = vmatprep.subr.mxu0 0.0
    %830 = vmatpush1.msra.mxu0 0.0
    %831 = vmatprep.subr.mxu0 0.0
    %832 = vmatpush1.msra.mxu0 0.0
    %833 = vmatprep.subr.mxu0 0.0
    %834 = vmatpush1.msra.mxu0 0.0
    %835 = vmatprep.subr.mxu0 0.0
    %836 = vmatpush1.msra.mxu0 0.0
    %837 = vmatprep.subr.mxu0 0.0
    %838 = vmatpush1.msra.mxu0 0.0
    %839 = vmatprep.subr.mxu0 0.0
    %840 = vmatpush1.msra.mxu0 0.0
    %841 = vmatprep.subr.mxu0 0.0
    %842 = vmatpush1.msra.mxu0 0.0
    %843 = vmatprep.subr.mxu0 0.0
    %844 = vmatpush1.msra.mxu0 0.0
    %845 = vmatprep.subr.mxu0 0.0
    %846 = vmatpush1.msra.mxu0 0.0
    %847 = vmatprep.subr.mxu0 0.0
    %848 = vmatpush1.msra.mxu0 0.0
    %849 = vmatprep.subr.mxu0 0.0
    %850 = vmatpush1.msra.mxu0 0.0
    %851 = vmatprep.subr.mxu0 0.0
    %852 = vmatpush1.msra.mxu0 0.0
    %853 = vmatprep.subr.mxu0 0.0
    %854 = vmatpush1.msra.mxu0 0.0
    %855 = vmatprep.subr.mxu0 0.0
    %856 = vmatpush1.msra.mxu0 0.0
    %857 = vmatprep.subr.mxu0 0.0
    %858 = vmatpush1.msra.mxu0 0.0
    %859 = vmatprep.subr.mxu0 0.0
    %860 = vmatpush1.msra.mxu0 0.0
    %861 = vmatprep.subr.mxu0 0.0
    %862 = vmatpush1.msra.mxu0 0.0
    %863 = vmatprep.subr.mxu0 0.0
    %864 = vmatpush1.msra.mxu0 0.0
    %865 = vmatprep.subr.mxu0 0.0
    %866 = vmatpush1.msra.mxu0 0.0
    %867 = vmatprep.mubr.f32.mxu0 0.0
    %868 = vmatmul.mubr.f32.gmra.mrb[0].mxu0 %v801
    %v869 = vpop.f32.mrb[0].mxu0
    %v870 = vadd.f32 0.0, %v869
    %v871 = vpop.f32.mrb[0].mxu0
    %872 = vdwg.mxu0
    %v874 = vrot.slane %v870, 2
    %v876 = vadd.f32 %v166, %v874
    %v877 = vmul.f32 %v174, %v876
    %v878 = vtanh.pop %v877
    %v879 = vmul.f32 %v174, %v878
    %v880 = vadd.f32 %v879, %v175
    %v882 = vrot.slane %v790, 7
    %v884 = vmul.f32 %v880, %v882
    %886 = vrot.lane.b32.xlu0 %v880, 64
    %v887 = vpop.permute.xlu0 %886
    %v889 = vmul.f32 %v880, %v887
    %891 = vrot.lane.b32.xlu0 %v889, 32
    %v892 = vpop.permute.xlu0 %891
    %v894 = vadd.f32 %v884, %v892
    %v895 = vtanh.pop %v894
    %897 = vrot.lane.b32.xlu0 %v895, 64
    %v898 = vpop.permute.xlu0 %897
    %v900 = vmul.f32 %v880, %v898
    %v902 = vrot.slane %v900, 6
    %903 = vrot.lane.b32.xlu0 %v902, 32
    %v904 = vpop.permute.xlu0 %903
    %v905 = vsel %vm178, %v904, 0
    %907 = vmatprep.subr.mxu0 0.0
    %908 = vmatpush1.msra.mxu0 %v46
    %909 = vmatprep.subr.mxu0 0.0
    %910 = vmatpush1.msra.mxu0 %v47
    %911 = vmatprep.subr.mxu0 0.0
    %912 = vmatpush1.msra.mxu0 %v48
    %913 = vmatprep.subr.mxu0 0.0
    %914 = vmatpush1.msra.mxu0 %v49
    %915 = vmatprep.subr.mxu0 0.0
    %916 = vmatpush1.msra.mxu0 0.0
    %917 = vmatprep.subr.mxu0 0.0
    %918 = vmatpush1.msra.mxu0 0.0
    %919 = vmatprep.subr.mxu0 0.0
    %920 = vmatpush1.msra.mxu0 0.0
    %921 = vmatprep.subr.mxu0 0.0
    %922 = vmatpush1.msra.mxu0 0.0
    %923 = vmatprep.subr.mxu0 0.0
    %924 = vmatpush1.msra.mxu0 0.0
    %925 = vmatprep.subr.mxu0 0.0
    %926 = vmatpush1.msra.mxu0 0.0
    %927 = vmatprep.subr.mxu0 0.0
    %928 = vmatpush1.msra.mxu0 0.0
    %929 = vmatprep.subr.mxu0 0.0
    %930 = vmatpush1.msra.mxu0 0.0
    %931 = vmatprep.subr.mxu0 0.0
    %932 = vmatpush1.msra.mxu0 0.0
    %933 = vmatprep.subr.mxu0 0.0
    %934 = vmatpush1.msra.mxu0 0.0
    %935 = vmatprep.subr.mxu0 0.0
    %936 = vmatpush1.msra.mxu0 0.0
    %937 = vmatprep.subr.mxu0 0.0
    %938 = vmatpush1.msra.mxu0 0.0
    %939 = vmatprep.subr.mxu0 0.0
    %940 = vmatpush1.msra.mxu0 0.0
    %941 = vmatprep.subr.mxu0 0.0
    %942 = vmatpush1.msra.mxu0 0.0
    %943 = vmatprep.subr.mxu0 0.0
    %944 = vmatpush1.msra.mxu0 0.0
    %945 = vmatprep.subr.mxu0 0.0
    %946 = vmatpush1.msra.mxu0 0.0
    %947 = vmatprep.subr.mxu0 0.0
    %948 = vmatpush1.msra.mxu0 0.0
    %949 = vmatprep.subr.mxu0 0.0
    %950 = vmatpush1.msra.mxu0 0.0
    %951 = vmatprep.subr.mxu0 0.0
    %952 = vmatpush1.msra.mxu0 0.0
    %953 = vmatprep.subr.mxu0 0.0
    %954 = vmatpush1.msra.mxu0 0.0
    %955 = vmatprep.subr.mxu0 0.0
    %956 = vmatpush1.msra.mxu0 0.0
    %957 = vmatprep.subr.mxu0 0.0
    %958 = vmatpush1.msra.mxu0 0.0
    %959 = vmatprep.subr.mxu0 0.0
    %960 = vmatpush1.msra.mxu0 0.0
    %961 = vmatprep.subr.mxu0 0.0
    %962 = vmatpush1.msra.mxu0 0.0
    %963 = vmatprep.subr.mxu0 0.0
    %964 = vmatpush1.msra.mxu0 0.0
    %965 = vmatprep.subr.mxu0 0.0
    %966 = vmatpush1.msra.mxu0 0.0
    %967 = vmatprep.subr.mxu0 0.0
    %968 = vmatpush1.msra.mxu0 0.0
    %969 = vmatprep.subr.mxu0 0.0
    %970 = vmatpush1.msra.mxu0 0.0
    %971 = vmatprep.mubr.f32.mxu0 0.0
    %972 = vmatmul.mubr.f32.gmra.mrb[0].mxu0 %v905
    %v973 = vpop.f32.mrb[0].mxu0
    %v974 = vadd.f32 0.0, %v973
    %v975 = vpop.f32.mrb[0].mxu0
    %976 = vdwg.mxu0
    %v978 = vrot.slane %v974, 1
    %v980 = vadd.f32 %v166, %v978
    %v981 = vmul.f32 %v174, %v980
    %v982 = vtanh.pop %v981
    %v983 = vmul.f32 %v174, %v982
    %v984 = vadd.f32 %v983, %v175
    %v986 = vrot.slane %v894, 7
    %v988 = vmul.f32 %v984, %v986
    %990 = vrot.lane.b32.xlu0 %v984, 64
    %v991 = vpop.permute.xlu0 %990
    %v993 = vmul.f32 %v984, %v991
    %995 = vrot.lane.b32.xlu0 %v993, 32
    %v996 = vpop.permute.xlu0 %995
    %v998 = vadd.f32 %v988, %v996
    %v999 = vtanh.pop %v998
    %1001 = vrot.lane.b32.xlu0 %v999, 64
    %v1002 = vpop.permute.xlu0 %1001
    %v1004 = vmul.f32 %v984, %v1002
    %vm1005 = vcmask 1040384
    %v1006 = vsel %vm1005, %v277, %v380
    %vm1007 = vcmask 1041408
    %v1008 = vsel %vm1007, %v1006, %v484
    %vm1009 = vcmask 1042432
    %v1010 = vsel %vm1009, %v1008, %v588
    %vm1011 = vcmask 1043456
    %v1012 = vsel %vm1011, %v1010, %v692
    %vm1013 = vcmask 1044480
    %v1014 = vsel %vm1013, %v1012, %v796
    %vm1015 = vcmask 1045504
    %v1016 = vsel %vm1015, %v1014, %v900
    %vm1017 = vcmask 1046528
    %v1018 = vsel %vm1017, %v1016, %v1004
    %v1019 = vlaneseq
    %v1020 = vshrl.u32 %v1019, 7
    %v1021 = vsub.s32 0, %v1020
    %v1022 = vrot.slane %v55, %v1021
    %1024 = vrot.lane.b32.xlu0 %v1018, 32
    %v1025 = vpop.permute.xlu0 %1024
    %v1026 = vsel %vm178, %v1025, 0
    %1028 = vmatprep.subr.mxu0 0.0
    %1029 = vmatpush1.msra.mxu0 %v51
    %1030 = vmatprep.subr.mxu0 0.0
    %1031 = vmatpush1.msra.mxu0 %v52
    %1032 = vmatprep.subr.mxu0 0.0
    %1033 = vmatpush1.msra.mxu0 %v53
    %1034 = vmatprep.subr.mxu0 0.0
    %1035 = vmatpush1.msra.mxu0 %v54
    %1036 = vmatprep.subr.mxu0 0.0
    %1037 = vmatpush1.msra.mxu0 0.0
    %1038 = vmatprep.subr.mxu0 0.0
    %1039 = vmatpush1.msra.mxu0 0.0
    %1040 = vmatprep.subr.mxu0 0.0
    %1041 = vmatpush1.msra.mxu0 0.0
    %1042 = vmatprep.subr.mxu0 0.0
    %1043 = vmatpush1.msra.mxu0 0.0
    %1044 = vmatprep.subr.mxu0 0.0
    %1045 = vmatpush1.msra.mxu0 0.0
    %1046 = vmatprep.subr.mxu0 0.0
    %1047 = vmatpush1.msra.mxu0 0.0
    %1048 = vmatprep.subr.mxu0 0.0
    %1049 = vmatpush1.msra.mxu0 0.0
    %1050 = vmatprep.subr.mxu0 0.0
    %1051 = vmatpush1.msra.mxu0 0.0
    %1052 = vmatprep.subr.mxu0 0.0
    %1053 = vmatpush1.msra.mxu0 0.0
    %1054 = vmatprep.subr.mxu0 0.0
    %1055 = vmatpush1.msra.mxu0 0.0
    %1056 = vmatprep.subr.mxu0 0.0
    %1057 = vmatpush1.msra.mxu0 0.0
    %1058 = vmatprep.subr.mxu0 0.0
    %1059 = vmatpush1.msra.mxu0 0.0
    %1060 = vmatprep.subr.mxu0 0.0
    %1061 = vmatpush1.msra.mxu0 0.0
    %1062 = vmatprep.subr.mxu0 0.0
    %1063 = vmatpush1.msra.mxu0 0.0
    %1064 = vmatprep.subr.mxu0 0.0
    %1065 = vmatpush1.msra.mxu0 0.0
    %1066 = vmatprep.subr.mxu0 0.0
    %1067 = vmatpush1.msra.mxu0 0.0
    %1068 = vmatprep.subr.mxu0 0.0
    %1069 = vmatpush1.msra.mxu0 0.0
    %1070 = vmatprep.subr.mxu0 0.0
    %1071 = vmatpush1.msra.mxu0 0.0
    %1072 = vmatprep.subr.mxu0 0.0
    %1073 = vmatpush1.msra.mxu0 0.0
    %1074 = vmatprep.subr.mxu0 0.0
    %1075 = vmatpush1.msra.mxu0 0.0
    %1076 = vmatprep.subr.mxu0 0.0
    %1077 = vmatpush1.msra.mxu0 0.0
    %1078 = vmatprep.subr.mxu0 0.0
    %1079 = vmatpush1.msra.mxu0 0.0
    %1080 = vmatprep.subr.mxu0 0.0
    %1081 = vmatpush1.msra.mxu0 0.0
    %1082 = vmatprep.subr.mxu0 0.0
    %1083 = vmatpush1.msra.mxu0 0.0
    %1084 = vmatprep.subr.mxu0 0.0
    %1085 = vmatpush1.msra.mxu0 0.0
    %1086 = vmatprep.subr.mxu0 0.0
    %1087 = vmatpush1.msra.mxu0 0.0
    %1088 = vmatprep.subr.mxu0 0.0
    %1089 = vmatpush1.msra.mxu0 0.0
    %1090 = vmatprep.subr.mxu0 0.0
    %1091 = vmatpush1.msra.mxu0 0.0
    %1092 = vmatprep.mubr.f32.mxu0 0.0
    %1093 = vmatmul.mubr.f32.gmra.mrb[0].mxu0 %v1026
    %v1094 = vpop.f32.mrb[0].mxu0
    %v1095 = vadd.f32 %v1022, %v1094
    %v1096 = vpop.f32.mrb[0].mxu0
    %1097 = vdwg.mxu0
    %v1098 = vmax.f32 %v1095, 0.0
    %v1099 = vlaneseq
    %v1100 = vshrl.u32 %v1099, 7
    %v1101 = vsub.s32 0, %v1100
    %v1102 = vrot.slane %v72, %v1101
    %1103 = vmatprep.subr.mxu0 0.0
    %1104 = vmatpush1.msra.mxu0 %v56
    %1105 = vmatprep.subr.mxu0 0.0
    %1106 = vmatpush1.msra.mxu0 %v57
    %1107 = vmatprep.subr.mxu0 0.0
    %1108 = vmatpush1.msra.mxu0 %v58
    %1109 = vmatprep.subr.mxu0 0.0
    %1110 = vmatpush1.msra.mxu0 %v59
    %1111 = vmatprep.subr.mxu0 0.0
    %1112 = vmatpush1.msra.mxu0 %v60
    %1113 = vmatprep.subr.mxu0 0.0
    %1114 = vmatpush1.msra.mxu0 %v61
    %1115 = vmatprep.subr.mxu0 0.0
    %1116 = vmatpush1.msra.mxu0 %v62
    %1117 = vmatprep.subr.mxu0 0.0
    %1118 = vmatpush1.msra.mxu0 %v63
    %1119 = vmatprep.subr.mxu0 0.0
    %1120 = vmatpush1.msra.mxu0 %v64
    %1121 = vmatprep.subr.mxu0 0.0
    %1122 = vmatpush1.msra.mxu0 %v65
    %1123 = vmatprep.subr.mxu0 0.0
    %1124 = vmatpush1.msra.mxu0 %v66
    %1125 = vmatprep.subr.mxu0 0.0
    %1126 = vmatpush1.msra.mxu0 %v67
    %1127 = vmatprep.subr.mxu0 0.0
    %1128 = vmatpush1.msra.mxu0 %v68
    %1129 = vmatprep.subr.mxu0 0.0
    %1130 = vmatpush1.msra.mxu0 %v69
    %1131 = vmatprep.subr.mxu0 0.0
    %1132 = vmatpush1.msra.mxu0 %v70
    %1133 = vmatprep.subr.mxu0 0.0
    %1134 = vmatpush1.msra.mxu0 %v71
    %1135 = vmatprep.subr.mxu0 0.0
    %1136 = vmatpush1.msra.mxu0 0.0
    %1137 = vmatprep.subr.mxu0 0.0
    %1138 = vmatpush1.msra.mxu0 0.0
    %1139 = vmatprep.subr.mxu0 0.0
    %1140 = vmatpush1.msra.mxu0 0.0
    %1141 = vmatprep.subr.mxu0 0.0
    %1142 = vmatpush1.msra.mxu0 0.0
    %1143 = vmatprep.subr.mxu0 0.0
    %1144 = vmatpush1.msra.mxu0 0.0
    %1145 = vmatprep.subr.mxu0 0.0
    %1146 = vmatpush1.msra.mxu0 0.0
    %1147 = vmatprep.subr.mxu0 0.0
    %1148 = vmatpush1.msra.mxu0 0.0
    %1149 = vmatprep.subr.mxu0 0.0
    %1150 = vmatpush1.msra.mxu0 0.0
    %1151 = vmatprep.subr.mxu0 0.0
    %1152 = vmatpush1.msra.mxu0 0.0
    %1153 = vmatprep.subr.mxu0 0.0
    %1154 = vmatpush1.msra.mxu0 0.0
    %1155 = vmatprep.subr.mxu0 0.0
    %1156 = vmatpush1.msra.mxu0 0.0
    %1157 = vmatprep.subr.mxu0 0.0
    %1158 = vmatpush1.msra.mxu0 0.0
    %1159 = vmatprep.subr.mxu0 0.0
    %1160 = vmatpush1.msra.mxu0 0.0
    %1161 = vmatprep.subr.mxu0 0.0
    %1162 = vmatpush1.msra.mxu0 0.0
    %1163 = vmatprep.subr.mxu0 0.0
    %1164 = vmatpush1.msra.mxu0 0.0
    %1165 = vmatprep.subr.mxu0 0.0
    %1166 = vmatpush1.msra.mxu0 0.0
    %1167 = vmatprep.mubr.f32.mxu0 0.0
    %1168 = vmatmul.mubr.f32.gmra.mrb[0].mxu0 %v1098
    %v1169 = vpop.f32.mrb[0].mxu0
    %v1170 = vadd.f32 %v1102, %v1169
    %v1171 = vpop.f32.mrb[0].mxu0
    %1172 = vdwg.mxu0
    %v1173 = vmax.f32 %v1170, 0.0
    %v1174 = vlaneseq
    %v1175 = vshrl.u32 %v1174, 7
    %v1176 = vsub.s32 0, %v1175
    %v1177 = vrot.slane %v89, %v1176
    %1178 = vmatprep.subr.mxu0 0.0
    %1179 = vmatpush1.msra.mxu0 %v73
    %1180 = vmatprep.subr.mxu0 0.0
    %1181 = vmatpush1.msra.mxu0 %v74
    %1182 = vmatprep.subr.mxu0 0.0
    %1183 = vmatpush1.msra.mxu0 %v75
    %1184 = vmatprep.subr.mxu0 0.0
    %1185 = vmatpush1.msra.mxu0 %v76
    %1186 = vmatprep.subr.mxu0 0.0
    %1187 = vmatpush1.msra.mxu0 %v77
    %1188 = vmatprep.subr.mxu0 0.0
    %1189 = vmatpush1.msra.mxu0 %v78
    %1190 = vmatprep.subr.mxu0 0.0
    %1191 = vmatpush1.msra.mxu0 %v79
    %1192 = vmatprep.subr.mxu0 0.0
    %1193 = vmatpush1.msra.mxu0 %v80
    %1194 = vmatprep.subr.mxu0 0.0
    %1195 = vmatpush1.msra.mxu0 %v81
    %1196 = vmatprep.subr.mxu0 0.0
    %1197 = vmatpush1.msra.mxu0 %v82
    %1198 = vmatprep.subr.mxu0 0.0
    %1199 = vmatpush1.msra.mxu0 %v83
    %1200 = vmatprep.subr.mxu0 0.0
    %1201 = vmatpush1.msra.mxu0 %v84
    %1202 = vmatprep.subr.mxu0 0.0
    %1203 = vmatpush1.msra.mxu0 %v85
    %1204 = vmatprep.subr.mxu0 0.0
    %1205 = vmatpush1.msra.mxu0 %v86
    %1206 = vmatprep.subr.mxu0 0.0
    %1207 = vmatpush1.msra.mxu0 %v87
    %1208 = vmatprep.subr.mxu0 0.0
    %1209 = vmatpush1.msra.mxu0 %v88
    %1210 = vmatprep.subr.mxu0 0.0
    %1211 = vmatpush1.msra.mxu0 0.0
    %1212 = vmatprep.subr.mxu0 0.0
    %1213 = vmatpush1.msra.mxu0 0.0
    %1214 = vmatprep.subr.mxu0 0.0
    %1215 = vmatpush1.msra.mxu0 0.0
    %1216 = vmatprep.subr.mxu0 0.0
    %1217 = vmatpush1.msra.mxu0 0.0
    %1218 = vmatprep.subr.mxu0 0.0
    %1219 = vmatpush1.msra.mxu0 0.0
    %1220 = vmatprep.subr.mxu0 0.0
    %1221 = vmatpush1.msra.mxu0 0.0
    %1222 = vmatprep.subr.mxu0 0.0
    %1223 = vmatpush1.msra.mxu0 0.0
    %1224 = vmatprep.subr.mxu0 0.0
    %1225 = vmatpush1.msra.mxu0 0.0
    %1226 = vmatprep.subr.mxu0 0.0
    %1227 = vmatpush1.msra.mxu0 0.0
    %1228 = vmatprep.subr.mxu0 0.0
    %1229 = vmatpush1.msra.mxu0 0.0
    %1230 = vmatprep.subr.mxu0 0.0
    %1231 = vmatpush1.msra.mxu0 0.0
    %1232 = vmatprep.subr.mxu0 0.0
    %1233 = vmatpush1.msra.mxu0 0.0
    %1234 = vmatprep.subr.mxu0 0.0
    %1235 = vmatpush1.msra.mxu0 0.0
    %1236 = vmatprep.subr.mxu0 0.0
    %1237 = vmatpush1.msra.mxu0 0.0
    %1238 = vmatprep.subr.mxu0 0.0
    %1239 = vmatpush1.msra.mxu0 0.0
    %1240 = vmatprep.subr.mxu0 0.0
    %1241 = vmatpush1.msra.mxu0 0.0
    %1242 = vmatprep.mubr.f32.mxu0 0.0
    %1243 = vmatmul.mubr.f32.gmra.mrb[0].mxu0 %v1173
    %v1244 = vpop.f32.mrb[0].mxu0
    %v1245 = vadd.f32 %v1177, %v1244
    %v1246 = vpop.f32.mrb[0].mxu0
    %1247 = vdwg.mxu0
    %1248 = vst [vmem:[#allocation7] sm:$0xff] %v1245
    %v1250 = vrot.slane %v1004, 7
    %v1253 = vrot.slane %v998, 6
    %1254 = vrot.lane.b32.xlu0 %v1253, 64
    %v1255 = vpop.permute.xlu0 %1254
    %v1257 = vsel %vm1005, %v1250, %v1255
    %1259 = vrot.lane.b32.xlu0 %v1257, 32
    %v1260 = vpop.permute.xlu0 %1259
    %vm1262 = vcmask 254976
    %1263 = vst.msk [vmem:[#allocation8] sm:$0x3] %vm1262, %v1260
    // Predicated region
    $region22: #{tpu_custom_call.1} parent=1 // pred_check
      _
    $region23: #{tpu_custom_call.1} parent=1 // pred_check_branch
      %1265 = sbr.rel (0) target = $region25
    $region24: #{tpu_custom_call.1} parent=1 // pred_region
      %s1267 = ssub.s32 128, 128
      %1268 = vsyncadd [#allocation4], %s1267
      %s1270 = sshll.u32 [#allocation7], 4
      %s1271 = int_to_ptr.vmem [resolvable:$true] %s1270
      %1273 = dma.vmem_to_hbm [thread:$0]  %s1271, 128, %s3, [#allocation4]
    $region25: #{tpu_custom_call.1} parent=1 // pred_fallthru
      _
    // Predicated region
    $region26: #{tpu_custom_call.1} parent=1 // pred_check
      _
    $region27: #{tpu_custom_call.1} parent=1 // pred_check_branch
      %1275 = sbr.rel (0) target = $region29
    $region28: #{tpu_custom_call.1} parent=1 // pred_region
      %s1277 = ssub.s32 32, 32
      %1278 = vsyncadd [#allocation9], %s1277
      %s1280 = sshll.u32 [#allocation8], 4
      %s1281 = int_to_ptr.vmem [resolvable:$true] %s1280
      %1283 = dma.vmem_to_hbm [thread:$0]  %s1281, 32, %s4, [#allocation9]
    $region29: #{tpu_custom_call.1} parent=1 // pred_fallthru
      _
    // Predicated region
    $region30: #{tpu_custom_call.1} parent=1 // pred_check
      _
    $region31: #{tpu_custom_call.1} parent=1 // pred_check_branch
      %1285 = sbr.rel (0) target = $region33
    $region32: #{tpu_custom_call.1} parent=1 // pred_region
      %1286 = dma.done [#allocation4], 128
    $region33: #{tpu_custom_call.1} parent=1 // pred_fallthru
      _
    // Predicated region
    $region34: #{tpu_custom_call.1} parent=1 // pred_check
      _
    $region35: #{tpu_custom_call.1} parent=1 // pred_check_branch
      %1288 = sbr.rel (0) target = $region37
    $region36: #{tpu_custom_call.1} parent=1 // pred_region
      %1289 = dma.done [#allocation9], 32
    $region37: #{tpu_custom_call.1} parent=1 // pred_fallthru
      _
    %1290 = vsyncpa [#allocation3], 1
    %1291 = vsyncpa [#allocation6], 1
    %1292 = vsyncpa [#allocation4], 1
    %1293 = vsyncpa [#allocation9], 1

</llo_original>
